<compile_context>
chip_gen: v5e
topology: v5e:2x2
jax: 0.10.0
libtpu: 0.0.40
codegen_flags: <defaults>
</compile_context>

<pallas_src>
import functools

import jax
import jax.numpy as jnp
import numpy as np
from jax import lax
from jax.experimental import pallas as pl
from jax.experimental.pallas import tpu as pltpu

_NEG_BIG = -1e30  # large finite negative: masked scores, no NaN on full rows


def _ceil_to(x, m):
    return ((x + m - 1) // m) * m


def _pick_block(dim, pref):
    """Largest MXU-friendly block <= pref that divides dim (avoids jnp.pad)."""
    if dim <= pref:
        return dim
    for cand in (pref, 512, 256, 128):
        if cand <= pref and dim % cand == 0:
            return cand
    return pref  # fall back to padding


# ----------------------------- tiled matmul ----------------------------------

def _matmul_kernel(x_ref, w_ref, o_ref, acc_ref, *, cdt):
    @pl.when(pl.program_id(2) == 0)
    def _():
        acc_ref[...] = jnp.zeros_like(acc_ref)

    acc_ref[...] += jnp.dot(x_ref[...].astype(cdt), w_ref[...].astype(cdt),
                            preferred_element_type=jnp.float32)

    @pl.when(pl.program_id(2) == pl.num_programs(2) - 1)
    def _():
        o_ref[...] = acc_ref[...].astype(o_ref.dtype)


def pallas_matmul(x, w, *, out_dtype=None, compute_dtype=jnp.bfloat16,
                  tm=512, tk=512, tn=512):
    """x: (M, K) @ w: (K, N) -> (M, N). bf16 MXU feed, f32 accumulation."""
    M, K = x.shape
    K2, N = w.shape
    assert K == K2
    out_dtype = x.dtype if out_dtype is None else out_dtype

    # Weights are re-read across M tiles: cast once up front. Activations are
    # cast per-tile inside the kernel (no extra HBM cast pass).
    w = w.astype(compute_dtype)

    bm, bk, bn = _pick_block(M, tm), _pick_block(K, tk), _pick_block(N, tn)
    Mp, Kp, Np = _ceil_to(M, bm), _ceil_to(K, bk), _ceil_to(N, bn)
    if (Mp, Kp) != (M, K):
        x = jnp.pad(x, ((0, Mp - M), (0, Kp - K)))
    if (Kp, Np) != (K, N):
        w = jnp.pad(w, ((0, Kp - K), (0, Np - N)))

    kernel = functools.partial(_matmul_kernel, cdt=compute_dtype)
    out = pl.pallas_call(
        kernel,
        out_shape=jax.ShapeDtypeStruct((Mp, Np), out_dtype),
        grid_spec=pltpu.PrefetchScalarGridSpec(
            num_scalar_prefetch=0,
            grid=(Mp // bm, Np // bn, Kp // bk),
            in_specs=[pl.BlockSpec((bm, bk), lambda i, j, k: (i, k)),
                      pl.BlockSpec((bk, bn), lambda i, j, k: (k, j))],
            out_specs=pl.BlockSpec((bm, bn), lambda i, j, k: (i, j)),
            scratch_shapes=[pltpu.VMEM((bm, bn), jnp.float32)],
        ),
        compiler_params=pltpu.CompilerParams(
            dimension_semantics=("parallel", "parallel", "arbitrary")),
    )(x, w)

    if (Mp, Np) != (M, N):
        out = out[:M, :N]
    return out


# -------------------- fused Q/KV projection (self-attention) -----------------

def _fused_qkv_kernel(x_ref, wq_ref, wkv_ref, q_ref, kv_ref,
                      accq_ref, acckv_ref, *, cdt):
    @pl.when(pl.program_id(1) == 0)
    def _():
        accq_ref[...] = jnp.zeros_like(accq_ref)
        acckv_ref[...] = jnp.zeros_like(acckv_ref)

    x_c = x_ref[...].astype(cdt)          # activation tile read once, used twice
    accq_ref[...] += jnp.dot(x_c, wq_ref[...], preferred_element_type=jnp.float32)
    acckv_ref[...] += jnp.dot(x_c, wkv_ref[...], preferred_element_type=jnp.float32)

    @pl.when(pl.program_id(1) == pl.num_programs(1) - 1)
    def _():
        q_ref[...] = accq_ref[...].astype(q_ref.dtype)
        kv_ref[...] = acckv_ref[...].astype(kv_ref.dtype)


def _fused_qkv_proj(x2d, w_q_hd, w_kv_khd, *, compute_dtype, tm=512, tk=512):
    """x2d: (M, K). Returns q (M, hd) and kv (M, 2*hd); x read from HBM once."""
    M, K = x2d.shape
    hd = w_q_hd.shape[0]
    wq = w_q_hd.T.astype(compute_dtype)     # (K, hd)
    wkv = w_kv_khd.T.astype(compute_dtype)  # (K, 2*hd)

    bm, bk = _pick_block(M, tm), _pick_block(K, tk)
    Mp, Kp = _ceil_to(M, bm), _ceil_to(K, bk)
    if (Mp, Kp) != (M, K):
        x2d = jnp.pad(x2d, ((0, Mp - M), (0, Kp - K)))
    if Kp != K:
        wq = jnp.pad(wq, ((0, Kp - K), (0, 0)))
        wkv = jnp.pad(wkv, ((0, Kp - K), (0, 0)))

    kernel = functools.partial(_fused_qkv_kernel, cdt=compute_dtype)
    q, kv = pl.pallas_call(
        kernel,
        out_shape=(jax.ShapeDtypeStruct((Mp, hd), compute_dtype),
                   jax.ShapeDtypeStruct((Mp, 2 * hd), compute_dtype)),
        grid_spec=pltpu.PrefetchScalarGridSpec(
            num_scalar_prefetch=0,
            grid=(Mp // bm, Kp // bk),
            in_specs=[pl.BlockSpec((bm, bk), lambda i, k: (i, k)),
                      pl.BlockSpec((bk, hd), lambda i, k: (k, 0)),
                      pl.BlockSpec((bk, 2 * hd), lambda i, k: (k, 0))],
            out_specs=[pl.BlockSpec((bm, hd), lambda i, k: (i, 0)),
                       pl.BlockSpec((bm, 2 * hd), lambda i, k: (i, 0))],
            scratch_shapes=[pltpu.VMEM((bm, hd), jnp.float32),
                            pltpu.VMEM((bm, 2 * hd), jnp.float32)],
        ),
        compiler_params=pltpu.CompilerParams(
            dimension_semantics=("parallel", "arbitrary")),
    )(x2d, wq, wkv)

    if Mp != M:
        q, kv = q[:M], kv[:M]
    return q, kv


# --------------------------- attention kernel ---------------------------------

def _attention_kernel(q_ref, kv_ref, *rest, heads, dim_head, s_valid,
                      has_mask, has_att):
    # q_ref : (1, Tt, H*Dh)     bf16, head-major (h outer, d inner), scale folded
    # kv_ref: (1, S_kv, 2*H*Dh) bf16, [K | V], each head-major
    # bias_ref (opt): (Tt, S_kv) bf16 additive mask (0 / -1e30)
    # o_ref : (1, Tt, H*Dh)     output already in 'b t (h d)' layout
    # att_ref (opt): (1, H, Tt, S_kv) attention probabilities
    idx = 0
    if has_mask:
        bias_ref = rest[idx]; idx += 1
    o_ref = rest[idx]; idx += 1
    att_ref = rest[idx] if has_att else None

    hd = heads * dim_head
    s_kv = kv_ref.shape[1]

    # Hoisted additive bias: user mask + (optional) key-padding validity mask.
    extra_bias = None
    if s_kv > s_valid:
        col = lax.broadcasted_iota(jnp.int32, (1, s_kv), 1)
        extra_bias = jnp.where(col < s_valid, 0.0, _NEG_BIG).astype(jnp.float32)
    if has_mask:
        b = bias_ref[...].astype(jnp.float32)
        extra_bias = b if extra_bias is None else b + extra_bias

    for h in range(heads):          # static unroll; per-head 2-D MXU matmuls
        lo = h * dim_head
        q_h = q_ref[0, :, lo:lo + dim_head]             # (Tt, Dh)  ref-slice view
        k_h = kv_ref[0, :, lo:lo + dim_head]            # (S,  Dh)
        v_h = kv_ref[0, :, hd + lo:hd + lo + dim_head]  # (S,  Dh)

        # QK^T contracting last dims -> no materialized K transpose.
        s = lax.dot_general(q_h, k_h, (((1,), (1,)), ((), ())),
                            preferred_element_type=jnp.float32)   # (Tt, S)
        if extra_bias is not None:
            s = s + extra_bias

        m = jnp.max(s, axis=-1, keepdims=True)
        e = jnp.exp(s - m)
        inv = pl.reciprocal(jnp.sum(e, axis=-1, keepdims=True), approx=True)
        p = e * inv

        if has_att:
            att_ref[0, h] = p.astype(att_ref.dtype)
        o = jnp.dot(p.astype(v_h.dtype), v_h,
                    preferred_element_type=jnp.float32)           # (Tt, Dh)
        o_ref[0, :, lo:lo + dim_head] = o.astype(o_ref.dtype)


# ------------------------------ module wrapper --------------------------------

def multi_head_attention(x, memory, w_q, w_kv, w_0, *, heads, dim_head,
                         mask=None, compute_dtype=jnp.bfloat16,
                         attn_dtype=jnp.bfloat16, return_attention=True,
                         tile_t=128):
    """Reproduces MultiHeadAttention.forward.

    x:      (B, T, dim_q)
    memory: (B, S, dim_kv) or None (self-attention -> fused Q/KV projection)
    w_q:    (_dim, dim_q)      nn.Linear weight (y = x @ W^T)
    w_kv:   (2*_dim, dim_kv)
    w_0:    (dim_q, _dim)
    mask:   optional bool (T, S); True entries are masked out.

    Returns (out, attention): (B, T, dim_q), (B, H, T, S) (or None).
    tile_t: attention query tile; sweep 256 on v6e, keep 128 on v7x.
    """
    self_attn = memory is None
    if self_attn:
        memory = x
    B, T, dim_q = x.shape
    _, S, dim_kv = memory.shape
    hd = heads * dim_head
    scale = float(dim_head) ** (-0.5)

    # Fold the einops head-split rearranges into the projection weights so the
    # outputs come out head-major (h outer, d inner); fold the softmax scale
    # into the query weight (removes an HxTtxS VPU multiply per grid step).
    w_q_hd = (w_q.reshape(dim_head, heads, dim_q)
                  .transpose(1, 0, 2).reshape(hd, dim_q)) * scale
    w_kv_khd = (w_kv.reshape(dim_head, 2, heads, dim_kv)
                    .transpose(1, 2, 0, 3).reshape(2 * hd, dim_kv))

    # Query-tile the sequence; pad T up to a multiple of tile_t when needed
    # instead of falling back to a full-T block (keeps VMEM bounded on v7x).
    if T > tile_t:
        tt = tile_t
        T_p = _ceil_to(T, tile_t)
    else:
        tt, T_p = T, T
    if T_p != T:
        x = jnp.pad(x, ((0, 0), (0, T_p - T), (0, 0)))

    if self_attn:
        q2d, kv2d = _fused_qkv_proj(x.reshape(B * T_p, dim_q), w_q_hd, w_kv_khd,
                                    compute_dtype=compute_dtype)
        q_proj = q2d.reshape(B, T_p, hd)
        kv_proj = kv2d.reshape(B, T_p, 2 * hd)
        s_kv = T_p                      # kv rows include any T padding
    else:
        q_proj = pallas_matmul(x.reshape(B * T_p, dim_q), w_q_hd.T,
                               out_dtype=compute_dtype,
                               compute_dtype=compute_dtype).reshape(B, T_p, hd)
        kv_proj = pallas_matmul(memory.reshape(B * S, dim_kv), w_kv_khd.T,
                                out_dtype=compute_dtype,
                                compute_dtype=compute_dtype).reshape(B, S, 2 * hd)
        s_kv = S

    nt = T_p // tt
    in_specs = [
        pl.BlockSpec((1, tt, hd), lambda b, t: (b, t, 0)),
        # KV block index invariant along t -> fetched once per batch element.
        pl.BlockSpec((1, s_kv, 2 * hd), lambda b, t: (b, 0, 0)),
    ]
    args = [q_proj, kv_proj]
    has_mask = mask is not None
    if has_mask:
        # bf16 additive bias (half the HBM traffic of f32); large finite
        # negative avoids NaNs on fully-masked rows.
        bias = jnp.where(mask, _NEG_BIG, 0.0).astype(compute_dtype)
        if bias.shape != (T_p, s_kv):
            bias = jnp.pad(bias, ((0, T_p - T), (0, s_kv - S)))
        in_specs.append(pl.BlockSpec((tt, s_kv), lambda b, t: (t, 0)))
        args.append(bias)

    out_shapes = [jax.ShapeDtypeStruct((B, T_p, hd), compute_dtype)]
    out_specs = [pl.BlockSpec((1, tt, hd), lambda b, t: (b, t, 0))]
    if return_attention:
        out_shapes.append(jax.ShapeDtypeStruct((B, heads, T_p, s_kv), attn_dtype))
        out_specs.append(pl.BlockSpec((1, heads, tt, s_kv),
                                      lambda b, t: (b, 0, t, 0)))

    kernel = functools.partial(_attention_kernel, heads=heads,
                               dim_head=dim_head, s_valid=S,
                               has_mask=has_mask, has_att=return_attention)

    res = pl.pallas_call(
        kernel,
        out_shape=tuple(out_shapes),
        grid_spec=pltpu.PrefetchScalarGridSpec(
            num_scalar_prefetch=0,
            grid=(B, nt),
            in_specs=in_specs,
            out_specs=out_specs,
        ),
        compiler_params=pltpu.CompilerParams(
            dimension_semantics=("parallel", "parallel"),
            vmem_limit_bytes=48 * 1024 * 1024),
    )(*args)

    if return_attention:
        out, attention = res
    else:
        out, = res
        attention = None

    # out is already 'b t (h d)' -> feed W_0 directly, no transpose needed.
    final = pallas_matmul(out.reshape(B * T_p, hd), w_0.T,
                          out_dtype=jnp.float32,
                          compute_dtype=compute_dtype).reshape(B, T_p, dim_q)
    if T_p != T:
        final = final[:, :T, :]
        if attention is not None:
            attention = attention[:, :, :T, :]
    if attention is not None and s_kv != S:
        attention = attention[:, :, :, :S]
    return final, attention


# --------------------------- pure-JAX reference ------------------------------

def reference_mha(x, memory, w_q, w_kv, w_0, *, heads, dim_head, mask=None):
    B, T, dim_q = x.shape
    _, S, _ = memory.shape
    hd = heads * dim_head
    hp = jax.lax.Precision.HIGHEST
    q = jnp.einsum("btc,dc->btd", x, w_q, precision=hp)
    kv = jnp.einsum("bsc,dc->bsd", memory, w_kv, precision=hp)
    q = q.reshape(B, T, dim_head, heads).transpose(0, 3, 1, 2)
    kv = kv.reshape(B, S, dim_head, 2, heads).transpose(3, 0, 4, 1, 2)
    k, v = kv[0], kv[1]
    s = jnp.einsum("bhtd,bhsd->bhts", q, k, precision=hp) * (dim_head ** -0.5)
    if mask is not None:
        s = jnp.where(mask, -jnp.inf, s)
    attn = jax.nn.softmax(s, axis=-1)
    out = jnp.einsum("bhts,bhsd->bhtd", attn, v, precision=hp)
    out = out.transpose(0, 2, 1, 3).reshape(B, T, hd)
    final = jnp.einsum("btd,cd->btc", out, w_0, precision=hp)
    return final, attn


def _check(a, b, atol=2e-2, rtol=2e-2):
    np.testing.assert_allclose(np.asarray(jnp.asarray(a, jnp.float32)),
                               np.asarray(jnp.asarray(b, jnp.float32)),
                               atol=atol, rtol=rtol)


# ---------------------------------- main --------------------------------------

if __name__ == "__main__":
    B, T = 2, 8
    heads, dim_head = 4, 8
    dim_q = 32
    _dim = heads * dim_head

    key = jax.random.PRNGKey(0)
    kx, km, kq, kkv, kkv2, k0 = jax.random.split(key, 6)

    x = jax.random.normal(kx, (B, T, dim_q), dtype=jnp.float32)

    # nn.Linear weight shapes: (out_features, in_features).
    w_q = 0.1 * jax.random.normal(kq, (_dim, dim_q), dtype=jnp.float32)
    w_kv = 0.1 * jax.random.normal(kkv, (2 * _dim, dim_q), dtype=jnp.float32)
    w_0 = 0.1 * jax.random.normal(k0, (dim_q, _dim), dtype=jnp.float32)

    mha = jax.jit(functools.partial(multi_head_attention,
                                    heads=heads, dim_head=dim_head))

    # 1) Self-attention (memory=None -> fused Q/KV projection), no mask.
    out, attn = mha(x, None, w_q, w_kv, w_0)
    out = jax.block_until_ready(out)
    attn = jax.block_until_ready(attn)
    ref_out, ref_attn = reference_mha(x, x, w_q, w_kv, w_0,
                                      heads=heads, dim_head=dim_head)
    _check(out, ref_out)
    _check(attn, ref_attn)
    assert out.shape == (B, T, dim_q)
    assert attn.shape == (B, heads, T, T)

    # 2) Self-attention with a causal mask (no fully-masked rows).
    causal = ~jnp.tril(jnp.ones((T, T), dtype=bool))
    out_m, attn_m = mha(x, None, w_q, w_kv, w_0, mask=causal)
    out_m = jax.block_until_ready(out_m)
    ref_out_m, ref_attn_m = reference_mha(x, x, w_q, w_kv, w_0,
                                          heads=heads, dim_head=dim_head,
                                          mask=causal)
    _check(out_m, ref_out_m)
    _check(attn_m, ref_attn_m)

    # 3) Cross-attention (separate projections path), different S / dim_kv.
    S, dim_kv = 16, 48
    memory = jax.random.normal(km, (B, S, dim_kv), dtype=jnp.float32)
    w_kv_x = 0.1 * jax.random.normal(kkv2, (2 * _dim, dim_kv), dtype=jnp.float32)
    out_c, attn_c = mha(x, memory, w_q, w_kv_x, w_0)
    out_c = jax.block_until_ready(out_c)
    ref_out_c, ref_attn_c = reference_mha(x, memory, w_q, w_kv_x, w_0,
                                          heads=heads, dim_head=dim_head)
    _check(out_c, ref_out_c)
    _check(attn_c, ref_attn_c)
    assert attn_c.shape == (B, heads, T, S)

    print("KERNEL_OK")
</pallas_src>

<mosaic_0001>
module attributes {stable_mosaic.version = 11 : i64} {
  func.func @_fused_qkv_kernel(%arg0: i32, %arg1: i32, %arg2: memref<16x32xf32, #tpu.memory_space<vmem>>, %arg3: memref<32x32xbf16, #tpu.memory_space<vmem>>, %arg4: memref<32x64xbf16, #tpu.memory_space<vmem>>, %arg5: memref<16x32xbf16, #tpu.memory_space<vmem>>, %arg6: memref<16x64xbf16, #tpu.memory_space<vmem>>, %arg7: memref<16x32xf32, #tpu.memory_space<vmem>>, %arg8: memref<16x64xf32, #tpu.memory_space<vmem>>) attributes {dimension_semantics = [#tpu.dimension_semantics<parallel>, #tpu.dimension_semantics<arbitrary>], iteration_bounds = array<i64: 1, 1>, scalar_prefetch = 0 : i64, scratch_operands = 2 : i64, tpu.core_type = #tpu.core_type<tc>, window_params = [{transform_indices = @transform_0, window_bounds = array<i64: 16, 32>}, {transform_indices = @transform_1, window_bounds = array<i64: 32, 32>}, {transform_indices = @transform_2, window_bounds = array<i64: 32, 64>}, {transform_indices = @transform_3, window_bounds = array<i64: 16, 32>}, {transform_indices = @transform_4, window_bounds = array<i64: 16, 64>}]} {
    %c0_i32 = arith.constant 0 : i32
    %0 = arith.cmpi eq, %arg1, %c0_i32 : i32
    %1 = arith.extui %0 : i1 to i32
    %c0_i32_0 = arith.constant 0 : i32
    %2 = arith.cmpi ne, %1, %c0_i32_0 : i32
    scf.if %2 {
      %cst_17 = arith.constant 0.000000e+00 : f32
      %18 = vector.broadcast %cst_17 : f32 to vector<16x32xf32>
      %c0_18 = arith.constant 0 : index
      %c0_19 = arith.constant 0 : index
      %19 = vector.load %arg7[%c0_18, %c0_19] : memref<16x32xf32, #tpu.memory_space<vmem>>, vector<16x32xf32>
      tpu.vector_store %arg7[%c0_18, %c0_19], %18 {strides = array<i32>} : memref<16x32xf32, #tpu.memory_space<vmem>>, vector<16x32xf32>,
      %cst_20 = arith.constant 0.000000e+00 : f32
      %20 = vector.broadcast %cst_20 : f32 to vector<16x64xf32>
      %c0_21 = arith.constant 0 : index
      %c0_22 = arith.constant 0 : index
      %21 = vector.load %arg8[%c0_21, %c0_22] : memref<16x64xf32, #tpu.memory_space<vmem>>, vector<16x64xf32>
      tpu.vector_store %arg8[%c0_21, %c0_22], %20 {strides = array<i32>} : memref<16x64xf32, #tpu.memory_space<vmem>>, vector<16x64xf32>,
    } else {
    }
    %c0 = arith.constant 0 : index
    %c0_1 = arith.constant 0 : index
    %3 = vector.load %arg2[%c0, %c0_1] : memref<16x32xf32, #tpu.memory_space<vmem>>, vector<16x32xf32>
    %4 = arith.truncf %3 : vector<16x32xf32> to vector<16x32xbf16>
    %c0_2 = arith.constant 0 : index
    %c0_3 = arith.constant 0 : index
    %5 = vector.load %arg7[%c0_2, %c0_3] : memref<16x32xf32, #tpu.memory_space<vmem>>, vector<16x32xf32>
    %c0_4 = arith.constant 0 : index
    %c0_5 = arith.constant 0 : index
    %6 = vector.load %arg3[%c0_4, %c0_5] : memref<32x32xbf16, #tpu.memory_space<vmem>>, vector<32x32xbf16>
    %cst = arith.constant dense<0.000000e+00> : vector<16x32xf32>
    %7 = tpu.matmul %4, %6, %cst {dimension_numbers = #tpu.dot_dimension_numbers<[1], [0], [0], [1], [0, 0, 1, 1], [], []>} : vector<16x32xbf16>, vector<32x32xbf16>, vector<16x32xf32> -> vector<16x32xf32>
    %8 = arith.addf %5, %7 : vector<16x32xf32>
    %c0_6 = arith.constant 0 : index
    %c0_7 = arith.constant 0 : index
    %9 = vector.load %arg7[%c0_6, %c0_7] : memref<16x32xf32, #tpu.memory_space<vmem>>, vector<16x32xf32>
    tpu.vector_store %arg7[%c0_6, %c0_7], %8 {strides = array<i32>} : memref<16x32xf32, #tpu.memory_space<vmem>>, vector<16x32xf32>,
    %c0_8 = arith.constant 0 : index
    %c0_9 = arith.constant 0 : index
    %10 = vector.load %arg8[%c0_8, %c0_9] : memref<16x64xf32, #tpu.memory_space<vmem>>, vector<16x64xf32>
    %c0_10 = arith.constant 0 : index
    %c0_11 = arith.constant 0 : index
    %11 = vector.load %arg4[%c0_10, %c0_11] : memref<32x64xbf16, #tpu.memory_space<vmem>>, vector<32x64xbf16>
    %cst_12 = arith.constant dense<0.000000e+00> : vector<16x64xf32>
    %12 = tpu.matmul %4, %11, %cst_12 {dimension_numbers = #tpu.dot_dimension_numbers<[1], [0], [0], [1], [0, 0, 1, 1], [], []>} : vector<16x32xbf16>, vector<32x64xbf16>, vector<16x64xf32> -> vector<16x64xf32>
    %13 = arith.addf %10, %12 : vector<16x64xf32>
    %c0_13 = arith.constant 0 : index
    %c0_14 = arith.constant 0 : index
    %14 = vector.load %arg8[%c0_13, %c0_14] : memref<16x64xf32, #tpu.memory_space<vmem>>, vector<16x64xf32>
    tpu.vector_store %arg8[%c0_13, %c0_14], %13 {strides = array<i32>} : memref<16x64xf32, #tpu.memory_space<vmem>>, vector<16x64xf32>,
    %c0_i32_15 = arith.constant 0 : i32
    %15 = arith.cmpi eq, %arg1, %c0_i32_15 : i32
    %16 = arith.extui %15 : i1 to i32
    %c0_i32_16 = arith.constant 0 : i32
    %17 = arith.cmpi ne, %16, %c0_i32_16 : i32
    scf.if %17 {
      %c0_17 = arith.constant 0 : index
      %c0_18 = arith.constant 0 : index
      %18 = vector.load %arg7[%c0_17, %c0_18] : memref<16x32xf32, #tpu.memory_space<vmem>>, vector<16x32xf32>
      %19 = arith.truncf %18 : vector<16x32xf32> to vector<16x32xbf16>
      %c0_19 = arith.constant 0 : index
      %c0_20 = arith.constant 0 : index
      %20 = vector.load %arg5[%c0_19, %c0_20] : memref<16x32xbf16, #tpu.memory_space<vmem>>, vector<16x32xbf16>
      tpu.vector_store %arg5[%c0_19, %c0_20], %19 {strides = array<i32>} : memref<16x32xbf16, #tpu.memory_space<vmem>>, vector<16x32xbf16>,
      %c0_21 = arith.constant 0 : index
      %c0_22 = arith.constant 0 : index
      %21 = vector.load %arg8[%c0_21, %c0_22] : memref<16x64xf32, #tpu.memory_space<vmem>>, vector<16x64xf32>
      %22 = arith.truncf %21 : vector<16x64xf32> to vector<16x64xbf16>
      %c0_23 = arith.constant 0 : index
      %c0_24 = arith.constant 0 : index
      %23 = vector.load %arg6[%c0_23, %c0_24] : memref<16x64xbf16, #tpu.memory_space<vmem>>, vector<16x64xbf16>
      tpu.vector_store %arg6[%c0_23, %c0_24], %22 {strides = array<i32>} : memref<16x64xbf16, #tpu.memory_space<vmem>>, vector<16x64xbf16>,
    } else {
    }
    return
  }
  func.func @transform_0(%arg0: i32, %arg1: i32) -> (i32, i32) {
    %c0_i32 = arith.constant 0 : i32
    return %arg0, %arg1 : i32, i32
  }
  func.func @transform_1(%arg0: i32, %arg1: i32) -> (i32, i32) {
    %c0_i32 = arith.constant 0 : i32
    %c0_i32_0 = arith.constant 0 : i32
    return %arg1, %c0_i32 : i32, i32
  }
  func.func @transform_2(%arg0: i32, %arg1: i32) -> (i32, i32) {
    %c0_i32 = arith.constant 0 : i32
    %c0_i32_0 = arith.constant 0 : i32
    return %arg1, %c0_i32 : i32, i32
  }
  func.func @transform_3(%arg0: i32, %arg1: i32) -> (i32, i32) {
    %c0_i32 = arith.constant 0 : i32
    %c0_i32_0 = arith.constant 0 : i32
    return %arg0, %c0_i32 : i32, i32
  }
  func.func @transform_4(%arg0: i32, %arg1: i32) -> (i32, i32) {
    %c0_i32 = arith.constant 0 : i32
    %c0_i32_0 = arith.constant 0 : i32
    return %arg0, %c0_i32 : i32, i32
  }
}

module attributes {stable_mosaic.version = 11 : i64} {
  func.func @_attention_kernel(%arg0: i32, %arg1: i32, %arg2: memref<1x8x32xbf16, #tpu.memory_space<vmem>>, %arg3: memref<1x8x64xbf16, #tpu.memory_space<vmem>>, %arg4: memref<1x8x32xbf16, #tpu.memory_space<vmem>>, %arg5: memref<1x4x8x8xbf16, #tpu.memory_space<vmem>>) attributes {dimension_semantics = [#tpu.dimension_semantics<parallel>, #tpu.dimension_semantics<parallel>], iteration_bounds = array<i64: 2, 1>, scalar_prefetch = 0 : i64, scratch_operands = 0 : i64, tpu.core_type = #tpu.core_type<tc>, window_params = [{transform_indices = @transform_0, window_bounds = array<i64: 1, 8, 32>}, {transform_indices = @transform_1, window_bounds = array<i64: 1, 8, 64>}, {transform_indices = @transform_2, window_bounds = array<i64: 1, 8, 32>}, {transform_indices = @transform_3, window_bounds = array<i64: 1, 4, 8, 8>}]} {
    %c0 = arith.constant 0 : index
    %c0_0 = arith.constant 0 : index
    %c0_1 = arith.constant 0 : index
    %0 = vector.load %arg2[%c0, %c0_0, %c0_1] : memref<1x8x32xbf16, #tpu.memory_space<vmem>>, vector<1x8x8xbf16>
    %1 = vector.shape_cast %0 : vector<1x8x8xbf16> to vector<8x8xbf16>
    %c0_2 = arith.constant 0 : index
    %c0_3 = arith.constant 0 : index
    %c0_4 = arith.constant 0 : index
    %2 = vector.load %arg3[%c0_2, %c0_3, %c0_4] : memref<1x8x64xbf16, #tpu.memory_space<vmem>>, vector<1x8x8xbf16>
    %3 = vector.shape_cast %2 : vector<1x8x8xbf16> to vector<8x8xbf16>
    %c0_5 = arith.constant 0 : index
    %c0_6 = arith.constant 0 : index
    %c32 = arith.constant 32 : index
    %4 = vector.load %arg3[%c0_5, %c0_6, %c32] : memref<1x8x64xbf16, #tpu.memory_space<vmem>>, vector<1x8x8xbf16>
    %5 = vector.shape_cast %4 : vector<1x8x8xbf16> to vector<8x8xbf16>
    %cst = arith.constant dense<0.000000e+00> : vector<8x8xf32>
    %6 = tpu.matmul %1, %3, %cst {dimension_numbers = #tpu.dot_dimension_numbers<[1], [1], [0], [0], [0, 0, 1, 0], [], []>} : vector<8x8xbf16>, vector<8x8xbf16>, vector<8x8xf32> -> vector<8x8xf32>
    %cst_7 = arith.constant dense<0xFF800000> : vector<8xf32>
    %7 = vector.multi_reduction <maximumf>, %6, %cst_7 [1] : vector<8x8xf32> to vector<8xf32>
    %8 = vector.shape_cast %7 : vector<8xf32> to vector<8x1xf32>
    %9 = vector.broadcast %8 : vector<8x1xf32> to vector<8x8xf32>
    %10 = arith.subf %6, %9 : vector<8x8xf32>
    %11 = math.exp %10 : vector<8x8xf32>
    %cst_8 = arith.constant dense<0.000000e+00> : vector<8xf32>
    %12 = vector.multi_reduction <add>, %11, %cst_8 [1] : vector<8x8xf32> to vector<8xf32>
    %13 = vector.shape_cast %12 : vector<8xf32> to vector<8x1xf32>
    %14 = tpu.reciprocal %13 {approx = true} : vector<8x1xf32> -> vector<8x1xf32>
    %15 = vector.broadcast %14 : vector<8x1xf32> to vector<8x8xf32>
    %16 = arith.mulf %11, %15 : vector<8x8xf32>
    %17 = arith.truncf %16 : vector<8x8xf32> to vector<8x8xbf16>
    %c0_9 = arith.constant 0 : index
    %c0_10 = arith.constant 0 : index
    %c0_11 = arith.constant 0 : index
    %c0_12 = arith.constant 0 : index
    %18 = vector.load %arg5[%c0_9, %c0_10, %c0_11, %c0_12] : memref<1x4x8x8xbf16, #tpu.memory_space<vmem>>, vector<1x1x8x8xbf16>
    %19 = vector.shape_cast %18 : vector<1x1x8x8xbf16> to vector<8x8xbf16>
    %20 = vector.shape_cast %17 : vector<8x8xbf16> to vector<1x1x8x8xbf16>
    tpu.vector_store %arg5[%c0_9, %c0_10, %c0_11, %c0_12], %20 {strides = array<i32>} : memref<1x4x8x8xbf16, #tpu.memory_space<vmem>>, vector<1x1x8x8xbf16>,
    %21 = arith.truncf %16 : vector<8x8xf32> to vector<8x8xbf16>
    %cst_13 = arith.constant dense<0.000000e+00> : vector<8x8xf32>
    %22 = tpu.matmul %21, %5, %cst_13 {dimension_numbers = #tpu.dot_dimension_numbers<[1], [0], [0], [1], [0, 0, 1, 1], [], []>} : vector<8x8xbf16>, vector<8x8xbf16>, vector<8x8xf32> -> vector<8x8xf32>
    %23 = arith.truncf %22 : vector<8x8xf32> to vector<8x8xbf16>
    %c0_14 = arith.constant 0 : index
    %c0_15 = arith.constant 0 : index
    %c0_16 = arith.constant 0 : index
    %24 = vector.load %arg4[%c0_14, %c0_15, %c0_16] : memref<1x8x32xbf16, #tpu.memory_space<vmem>>, vector<1x8x8xbf16>
    %25 = vector.shape_cast %24 : vector<1x8x8xbf16> to vector<8x8xbf16>
    %26 = vector.shape_cast %23 : vector<8x8xbf16> to vector<1x8x8xbf16>
    tpu.vector_store %arg4[%c0_14, %c0_15, %c0_16], %26 {strides = array<i32>} : memref<1x8x32xbf16, #tpu.memory_space<vmem>>, vector<1x8x8xbf16>,
    %c0_17 = arith.constant 0 : index
    %c0_18 = arith.constant 0 : index
    %c8 = arith.constant 8 : index
    %27 = vector.load %arg2[%c0_17, %c0_18, %c8] : memref<1x8x32xbf16, #tpu.memory_space<vmem>>, vector<1x8x8xbf16>
    %28 = vector.shape_cast %27 : vector<1x8x8xbf16> to vector<8x8xbf16>
    %c0_19 = arith.constant 0 : index
    %c0_20 = arith.constant 0 : index
    %c8_21 = arith.constant 8 : index
    %29 = vector.load %arg3[%c0_19, %c0_20, %c8_21] : memref<1x8x64xbf16, #tpu.memory_space<vmem>>, vector<1x8x8xbf16>
    %30 = vector.shape_cast %29 : vector<1x8x8xbf16> to vector<8x8xbf16>
    %c0_22 = arith.constant 0 : index
    %c0_23 = arith.constant 0 : index
    %c40 = arith.constant 40 : index
    %31 = vector.load %arg3[%c0_22, %c0_23, %c40] : memref<1x8x64xbf16, #tpu.memory_space<vmem>>, vector<1x8x8xbf16>
    %32 = vector.shape_cast %31 : vector<1x8x8xbf16> to vector<8x8xbf16>
    %cst_24 = arith.constant dense<0.000000e+00> : vector<8x8xf32>
    %33 = tpu.matmul %28, %30, %cst_24 {dimension_numbers = #tpu.dot_dimension_numbers<[1], [1], [0], [0], [0, 0, 1, 0], [], []>} : vector<8x8xbf16>, vector<8x8xbf16>, vector<8x8xf32> -> vector<8x8xf32>
    %cst_25 = arith.constant dense<0xFF800000> : vector<8xf32>
    %34 = vector.multi_reduction <maximumf>, %33, %cst_25 [1] : vector<8x8xf32> to vector<8xf32>
    %35 = vector.shape_cast %34 : vector<8xf32> to vector<8x1xf32>
    %36 = vector.broadcast %35 : vector<8x1xf32> to vector<8x8xf32>
    %37 = arith.subf %33, %36 : vector<8x8xf32>
    %38 = math.exp %37 : vector<8x8xf32>
    %cst_26 = arith.constant dense<0.000000e+00> : vector<8xf32>
    %39 = vector.multi_reduction <add>, %38, %cst_26 [1] : vector<8x8xf32> to vector<8xf32>
    %40 = vector.shape_cast %39 : vector<8xf32> to vector<8x1xf32>
    %41 = tpu.reciprocal %40 {approx = true} : vector<8x1xf32> -> vector<8x1xf32>
    %42 = vector.broadcast %41 : vector<8x1xf32> to vector<8x8xf32>
    %43 = arith.mulf %38, %42 : vector<8x8xf32>
    %44 = arith.truncf %43 : vector<8x8xf32> to vector<8x8xbf16>
    %c0_27 = arith.constant 0 : index
    %c1 = arith.constant 1 : index
    %c0_28 = arith.constant 0 : index
    %c0_29 = arith.constant 0 : index
    %45 = vector.load %arg5[%c0_27, %c1, %c0_28, %c0_29] : memref<1x4x8x8xbf16, #tpu.memory_space<vmem>>, vector<1x1x8x8xbf16>
    %46 = vector.shape_cast %45 : vector<1x1x8x8xbf16> to vector<8x8xbf16>
    %47 = vector.shape_cast %44 : vector<8x8xbf16> to vector<1x1x8x8xbf16>
    tpu.vector_store %arg5[%c0_27, %c1, %c0_28, %c0_29], %47 {strides = array<i32>} : memref<1x4x8x8xbf16, #tpu.memory_space<vmem>>, vector<1x1x8x8xbf16>,
    %48 = arith.truncf %43 : vector<8x8xf32> to vector<8x8xbf16>
    %cst_30 = arith.constant dense<0.000000e+00> : vector<8x8xf32>
    %49 = tpu.matmul %48, %32, %cst_30 {dimension_numbers = #tpu.dot_dimension_numbers<[1], [0], [0], [1], [0, 0, 1, 1], [], []>} : vector<8x8xbf16>, vector<8x8xbf16>, vector<8x8xf32> -> vector<8x8xf32>
    %50 = arith.truncf %49 : vector<8x8xf32> to vector<8x8xbf16>
    %c0_31 = arith.constant 0 : index
    %c0_32 = arith.constant 0 : index
    %c8_33 = arith.constant 8 : index
    %51 = vector.load %arg4[%c0_31, %c0_32, %c8_33] : memref<1x8x32xbf16, #tpu.memory_space<vmem>>, vector<1x8x8xbf16>
    %52 = vector.shape_cast %51 : vector<1x8x8xbf16> to vector<8x8xbf16>
    %53 = vector.shape_cast %50 : vector<8x8xbf16> to vector<1x8x8xbf16>
    tpu.vector_store %arg4[%c0_31, %c0_32, %c8_33], %53 {strides = array<i32>} : memref<1x8x32xbf16, #tpu.memory_space<vmem>>, vector<1x8x8xbf16>,
    %c0_34 = arith.constant 0 : index
    %c0_35 = arith.constant 0 : index
    %c16 = arith.constant 16 : index
    %54 = vector.load %arg2[%c0_34, %c0_35, %c16] : memref<1x8x32xbf16, #tpu.memory_space<vmem>>, vector<1x8x8xbf16>
    %55 = vector.shape_cast %54 : vector<1x8x8xbf16> to vector<8x8xbf16>
    %c0_36 = arith.constant 0 : index
    %c0_37 = arith.constant 0 : index
    %c16_38 = arith.constant 16 : index
    %56 = vector.load %arg3[%c0_36, %c0_37, %c16_38] : memref<1x8x64xbf16, #tpu.memory_space<vmem>>, vector<1x8x8xbf16>
    %57 = vector.shape_cast %56 : vector<1x8x8xbf16> to vector<8x8xbf16>
    %c0_39 = arith.constant 0 : index
    %c0_40 = arith.constant 0 : index
    %c48 = arith.constant 48 : index
    %58 = vector.load %arg3[%c0_39, %c0_40, %c48] : memref<1x8x64xbf16, #tpu.memory_space<vmem>>, vector<1x8x8xbf16>
    %59 = vector.shape_cast %58 : vector<1x8x8xbf16> to vector<8x8xbf16>
    %cst_41 = arith.constant dense<0.000000e+00> : vector<8x8xf32>
    %60 = tpu.matmul %55, %57, %cst_41 {dimension_numbers = #tpu.dot_dimension_numbers<[1], [1], [0], [0], [0, 0, 1, 0], [], []>} : vector<8x8xbf16>, vector<8x8xbf16>, vector<8x8xf32> -> vector<8x8xf32>
    %cst_42 = arith.constant dense<0xFF800000> : vector<8xf32>
    %61 = vector.multi_reduction <maximumf>, %60, %cst_42 [1] : vector<8x8xf32> to vector<8xf32>
    %62 = vector.shape_cast %61 : vector<8xf32> to vector<8x1xf32>
    %63 = vector.broadcast %62 : vector<8x1xf32> to vector<8x8xf32>
    %64 = arith.subf %60, %63 : vector<8x8xf32>
    %65 = math.exp %64 : vector<8x8xf32>
    %cst_43 = arith.constant dense<0.000000e+00> : vector<8xf32>
    %66 = vector.multi_reduction <add>, %65, %cst_43 [1] : vector<8x8xf32> to vector<8xf32>
    %67 = vector.shape_cast %66 : vector<8xf32> to vector<8x1xf32>
    %68 = tpu.reciprocal %67 {approx = true} : vector<8x1xf32> -> vector<8x1xf32>
    %69 = vector.broadcast %68 : vector<8x1xf32> to vector<8x8xf32>
    %70 = arith.mulf %65, %69 : vector<8x8xf32>
    %71 = arith.truncf %70 : vector<8x8xf32> to vector<8x8xbf16>
    %c0_44 = arith.constant 0 : index
    %c2 = arith.constant 2 : index
    %c0_45 = arith.constant 0 : index
    %c0_46 = arith.constant 0 : index
    %72 = vector.load %arg5[%c0_44, %c2, %c0_45, %c0_46] : memref<1x4x8x8xbf16, #tpu.memory_space<vmem>>, vector<1x1x8x8xbf16>
    %73 = vector.shape_cast %72 : vector<1x1x8x8xbf16> to vector<8x8xbf16>
    %74 = vector.shape_cast %71 : vector<8x8xbf16> to vector<1x1x8x8xbf16>
    tpu.vector_store %arg5[%c0_44, %c2, %c0_45, %c0_46], %74 {strides = array<i32>} : memref<1x4x8x8xbf16, #tpu.memory_space<vmem>>, vector<1x1x8x8xbf16>,
    %75 = arith.truncf %70 : vector<8x8xf32> to vector<8x8xbf16>
    %cst_47 = arith.constant dense<0.000000e+00> : vector<8x8xf32>
    %76 = tpu.matmul %75, %59, %cst_47 {dimension_numbers = #tpu.dot_dimension_numbers<[1], [0], [0], [1], [0, 0, 1, 1], [], []>} : vector<8x8xbf16>, vector<8x8xbf16>, vector<8x8xf32> -> vector<8x8xf32>
    %77 = arith.truncf %76 : vector<8x8xf32> to vector<8x8xbf16>
    %c0_48 = arith.constant 0 : index
    %c0_49 = arith.constant 0 : index
    %c16_50 = arith.constant 16 : index
    %78 = vector.load %arg4[%c0_48, %c0_49, %c16_50] : memref<1x8x32xbf16, #tpu.memory_space<vmem>>, vector<1x8x8xbf16>
    %79 = vector.shape_cast %78 : vector<1x8x8xbf16> to vector<8x8xbf16>
    %80 = vector.shape_cast %77 : vector<8x8xbf16> to vector<1x8x8xbf16>
    tpu.vector_store %arg4[%c0_48, %c0_49, %c16_50], %80 {strides = array<i32>} : memref<1x8x32xbf16, #tpu.memory_space<vmem>>, vector<1x8x8xbf16>,
    %c0_51 = arith.constant 0 : index
    %c0_52 = arith.constant 0 : index
    %c24 = arith.constant 24 : index
    %81 = vector.load %arg2[%c0_51, %c0_52, %c24] : memref<1x8x32xbf16, #tpu.memory_space<vmem>>, vector<1x8x8xbf16>
    %82 = vector.shape_cast %81 : vector<1x8x8xbf16> to vector<8x8xbf16>
    %c0_53 = arith.constant 0 : index
    %c0_54 = arith.constant 0 : index
    %c24_55 = arith.constant 24 : index
    %83 = vector.load %arg3[%c0_53, %c0_54, %c24_55] : memref<1x8x64xbf16, #tpu.memory_space<vmem>>, vector<1x8x8xbf16>
    %84 = vector.shape_cast %83 : vector<1x8x8xbf16> to vector<8x8xbf16>
    %c0_56 = arith.constant 0 : index
    %c0_57 = arith.constant 0 : index
    %c56 = arith.constant 56 : index
    %85 = vector.load %arg3[%c0_56, %c0_57, %c56] : memref<1x8x64xbf16, #tpu.memory_space<vmem>>, vector<1x8x8xbf16>
    %86 = vector.shape_cast %85 : vector<1x8x8xbf16> to vector<8x8xbf16>
    %cst_58 = arith.constant dense<0.000000e+00> : vector<8x8xf32>
    %87 = tpu.matmul %82, %84, %cst_58 {dimension_numbers = #tpu.dot_dimension_numbers<[1], [1], [0], [0], [0, 0, 1, 0], [], []>} : vector<8x8xbf16>, vector<8x8xbf16>, vector<8x8xf32> -> vector<8x8xf32>
    %cst_59 = arith.constant dense<0xFF800000> : vector<8xf32>
    %88 = vector.multi_reduction <maximumf>, %87, %cst_59 [1] : vector<8x8xf32> to vector<8xf32>
    %89 = vector.shape_cast %88 : vector<8xf32> to vector<8x1xf32>
    %90 = vector.broadcast %89 : vector<8x1xf32> to vector<8x8xf32>
    %91 = arith.subf %87, %90 : vector<8x8xf32>
    %92 = math.exp %91 : vector<8x8xf32>
    %cst_60 = arith.constant dense<0.000000e+00> : vector<8xf32>
    %93 = vector.multi_reduction <add>, %92, %cst_60 [1] : vector<8x8xf32> to vector<8xf32>
    %94 = vector.shape_cast %93 : vector<8xf32> to vector<8x1xf32>
    %95 = tpu.reciprocal %94 {approx = true} : vector<8x1xf32> -> vector<8x1xf32>
    %96 = vector.broadcast %95 : vector<8x1xf32> to vector<8x8xf32>
    %97 = arith.mulf %92, %96 : vector<8x8xf32>
    %98 = arith.truncf %97 : vector<8x8xf32> to vector<8x8xbf16>
    %c0_61 = arith.constant 0 : index
    %c3 = arith.constant 3 : index
    %c0_62 = arith.constant 0 : index
    %c0_63 = arith.constant 0 : index
    %99 = vector.load %arg5[%c0_61, %c3, %c0_62, %c0_63] : memref<1x4x8x8xbf16, #tpu.memory_space<vmem>>, vector<1x1x8x8xbf16>
    %100 = vector.shape_cast %99 : vector<1x1x8x8xbf16> to vector<8x8xbf16>
    %101 = vector.shape_cast %98 : vector<8x8xbf16> to vector<1x1x8x8xbf16>
    tpu.vector_store %arg5[%c0_61, %c3, %c0_62, %c0_63], %101 {strides = array<i32>} : memref<1x4x8x8xbf16, #tpu.memory_space<vmem>>, vector<1x1x8x8xbf16>,
    %102 = arith.truncf %97 : vector<8x8xf32> to vector<8x8xbf16>
    %cst_64 = arith.constant dense<0.000000e+00> : vector<8x8xf32>
    %103 = tpu.matmul %102, %86, %cst_64 {dimension_numbers = #tpu.dot_dimension_numbers<[1], [0], [0], [1], [0, 0, 1, 1], [], []>} : vector<8x8xbf16>, vector<8x8xbf16>, vector<8x8xf32> -> vector<8x8xf32>
    %104 = arith.truncf %103 : vector<8x8xf32> to vector<8x8xbf16>
    %c0_65 = arith.constant 0 : index
    %c0_66 = arith.constant 0 : index
    %c24_67 = arith.constant 24 : index
    %105 = vector.load %arg4[%c0_65, %c0_66, %c24_67] : memref<1x8x32xbf16, #tpu.memory_space<vmem>>, vector<1x8x8xbf16>
    %106 = vector.shape_cast %105 : vector<1x8x8xbf16> to vector<8x8xbf16>
    %107 = vector.shape_cast %104 : vector<8x8xbf16> to vector<1x8x8xbf16>
    tpu.vector_store %arg4[%c0_65, %c0_66, %c24_67], %107 {strides = array<i32>} : memref<1x8x32xbf16, #tpu.memory_space<vmem>>, vector<1x8x8xbf16>,
    return
  }
  func.func @transform_0(%arg0: i32, %arg1: i32) -> (i32, i32, i32) {
    %c0_i32 = arith.constant 0 : i32
    %c0_i32_0 = arith.constant 0 : i32
    return %arg0, %arg1, %c0_i32 : i32, i32, i32
  }
  func.func @transform_1(%arg0: i32, %arg1: i32) -> (i32, i32, i32) {
    %c0_i32 = arith.constant 0 : i32
    %c0_i32_0 = arith.constant 0 : i32
    %c0_i32_1 = arith.constant 0 : i32
    return %arg0, %c0_i32, %c0_i32_0 : i32, i32, i32
  }
  func.func @transform_2(%arg0: i32, %arg1: i32) -> (i32, i32, i32) {
    %c0_i32 = arith.constant 0 : i32
    %c0_i32_0 = arith.constant 0 : i32
    return %arg0, %arg1, %c0_i32 : i32, i32, i32
  }
  func.func @transform_3(%arg0: i32, %arg1: i32) -> (i32, i32, i32, i32) {
    %c0_i32 = arith.constant 0 : i32
    %c0_i32_0 = arith.constant 0 : i32
    %c0_i32_1 = arith.constant 0 : i32
    return %arg0, %c0_i32, %arg1, %c0_i32_0 : i32, i32, i32, i32
  }
}

module attributes {stable_mosaic.version = 11 : i64} {
  func.func @_matmul_kernel(%arg0: i32, %arg1: i32, %arg2: i32, %arg3: memref<16x32xbf16, #tpu.memory_space<vmem>>, %arg4: memref<32x32xbf16, #tpu.memory_space<vmem>>, %arg5: memref<16x32xf32, #tpu.memory_space<vmem>>, %arg6: memref<16x32xf32, #tpu.memory_space<vmem>>) attributes {dimension_semantics = [#tpu.dimension_semantics<parallel>, #tpu.dimension_semantics<parallel>, #tpu.dimension_semantics<arbitrary>], iteration_bounds = array<i64: 1, 1, 1>, scalar_prefetch = 0 : i64, scratch_operands = 1 : i64, tpu.core_type = #tpu.core_type<tc>, window_params = [{transform_indices = @transform_0, window_bounds = array<i64: 16, 32>}, {transform_indices = @transform_1, window_bounds = array<i64: 32, 32>}, {transform_indices = @transform_2, window_bounds = array<i64: 16, 32>}]} {
    %c0_i32 = arith.constant 0 : i32
    %0 = arith.cmpi eq, %arg2, %c0_i32 : i32
    %1 = arith.extui %0 : i1 to i32
    %c0_i32_0 = arith.constant 0 : i32
    %2 = arith.cmpi ne, %1, %c0_i32_0 : i32
    scf.if %2 {
      %cst_10 = arith.constant 0.000000e+00 : f32
      %12 = vector.broadcast %cst_10 : f32 to vector<16x32xf32>
      %c0_11 = arith.constant 0 : index
      %c0_12 = arith.constant 0 : index
      %13 = vector.load %arg6[%c0_11, %c0_12] : memref<16x32xf32, #tpu.memory_space<vmem>>, vector<16x32xf32>
      tpu.vector_store %arg6[%c0_11, %c0_12], %12 {strides = array<i32>} : memref<16x32xf32, #tpu.memory_space<vmem>>, vector<16x32xf32>,
    } else {
    }
    %c0 = arith.constant 0 : index
    %c0_1 = arith.constant 0 : index
    %3 = vector.load %arg6[%c0, %c0_1] : memref<16x32xf32, #tpu.memory_space<vmem>>, vector<16x32xf32>
    %c0_2 = arith.constant 0 : index
    %c0_3 = arith.constant 0 : index
    %4 = vector.load %arg3[%c0_2, %c0_3] : memref<16x32xbf16, #tpu.memory_space<vmem>>, vector<16x32xbf16>
    %c0_4 = arith.constant 0 : index
    %c0_5 = arith.constant 0 : index
    %5 = vector.load %arg4[%c0_4, %c0_5] : memref<32x32xbf16, #tpu.memory_space<vmem>>, vector<32x32xbf16>
    %cst = arith.constant dense<0.000000e+00> : vector<16x32xf32>
    %6 = tpu.matmul %4, %5, %cst {dimension_numbers = #tpu.dot_dimension_numbers<[1], [0], [0], [1], [0, 0, 1, 1], [], []>} : vector<16x32xbf16>, vector<32x32xbf16>, vector<16x32xf32> -> vector<16x32xf32>
    %7 = arith.addf %3, %6 : vector<16x32xf32>
    %c0_6 = arith.constant 0 : index
    %c0_7 = arith.constant 0 : index
    %8 = vector.load %arg6[%c0_6, %c0_7] : memref<16x32xf32, #tpu.memory_space<vmem>>, vector<16x32xf32>
    tpu.vector_store %arg6[%c0_6, %c0_7], %7 {strides = array<i32>} : memref<16x32xf32, #tpu.memory_space<vmem>>, vector<16x32xf32>,
    %c0_i32_8 = arith.constant 0 : i32
    %9 = arith.cmpi eq, %arg2, %c0_i32_8 : i32
    %10 = arith.extui %9 : i1 to i32
    %c0_i32_9 = arith.constant 0 : i32
    %11 = arith.cmpi ne, %10, %c0_i32_9 : i32
    scf.if %11 {
      %c0_10 = arith.constant 0 : index
      %c0_11 = arith.constant 0 : index
      %12 = vector.load %arg6[%c0_10, %c0_11] : memref<16x32xf32, #tpu.memory_space<vmem>>, vector<16x32xf32>
      %c0_12 = arith.constant 0 : index
      %c0_13 = arith.constant 0 : index
      %13 = vector.load %arg5[%c0_12, %c0_13] : memref<16x32xf32, #tpu.memory_space<vmem>>, vector<16x32xf32>
      tpu.vector_store %arg5[%c0_12, %c0_13], %12 {strides = array<i32>} : memref<16x32xf32, #tpu.memory_space<vmem>>, vector<16x32xf32>,
    } else {
    }
    return
  }
  func.func @transform_0(%arg0: i32, %arg1: i32, %arg2: i32) -> (i32, i32) {
    %c0_i32 = arith.constant 0 : i32
    return %arg0, %arg2 : i32, i32
  }
  func.func @transform_1(%arg0: i32, %arg1: i32, %arg2: i32) -> (i32, i32) {
    %c0_i32 = arith.constant 0 : i32
    return %arg2, %arg1 : i32, i32
  }
  func.func @transform_2(%arg0: i32, %arg1: i32, %arg2: i32) -> (i32, i32) {
    %c0_i32 = arith.constant 0 : i32
    return %arg0, %arg1 : i32, i32
  }
}

</mosaic_0001>

<llo_original>
// kernel: multi_head_attention.3
$region0: #{multi_head_attention.3}
  #allocation0 [shape = 'u32[]', space=smem, size = 0x4, offset = 0x4, fixed_abs, tag = 'smem constant byte address 0x4 - core index']
  #allocation1 [shape = 'u32[72,128]{1,0:T(1,128)}', space=vmem, size = 0x9000, scoped, tag = 'internal scratch']
  #allocation2 [shape = 'f32[16,32]{1,0:T(8,128)}', space=vmem, size = 0x2000, scoped, tag = 'scratch operand']
  #allocation3 [shape = 'f32[16,64]{1,0:T(8,128)}', space=vmem, size = 0x2000, scoped, tag = 'scratch operand']
  %s0 = inlined_call_operand.vmem [shape: f32[16,32], index: 0, kind: input, shape index: {}]
  %s1 = inlined_call_operand.vmem [shape: bf16[32,32], index: 1, kind: input, shape index: {}]
  %s2 = inlined_call_operand.vmem [shape: bf16[32,64], index: 2, kind: input, shape index: {}]
  %s3 = inlined_call_operand.vmem [shape: bf16[16,32], index: 3, kind: output, shape index: {0}]
  %s4 = inlined_call_operand.vmem [shape: bf16[16,64], index: 4, kind: output, shape index: {1}]
  %5 = xla_tuple %s3, %s4
  %s6 = sld [smem:[#allocation0]]
  $region38: #{multi_head_attention.3} parent=0
    _
  %s8 = ssub.s32 1, %s6
  %s9 = scalar_select 0, %s8, %s6
  // Predicated region
  $region2: #{multi_head_attention.3} parent=0 // pred_check
    _
  $region3: #{multi_head_attention.3} parent=0 // pred_check_branch
    %11 = sbr.rel (0) target = $region5
  $region4: #{multi_head_attention.3} parent=0 // pred_region
    _
  $region5: #{multi_head_attention.3} parent=0 // pred_fallthru
    _
  // Predicated region
  $region6: #{multi_head_attention.3} parent=0 // pred_check
    _
  $region7: #{multi_head_attention.3} parent=0 // pred_check_branch
    %13 = sbr.rel (0) target = $region9
  $region8: #{multi_head_attention.3} parent=0 // pred_region
    _
  $region9: #{multi_head_attention.3} parent=0 // pred_fallthru
    _
  // Predicated region
  $region10: #{multi_head_attention.3} parent=0 // pred_check
    _
  $region11: #{multi_head_attention.3} parent=0 // pred_check_branch
    %15 = sbr.rel (0) target = $region13
  $region12: #{multi_head_attention.3} parent=0 // pred_region
    _
  $region13: #{multi_head_attention.3} parent=0 // pred_fallthru
    _
  %p17 = scmp.eq.s32.totalorder 0, 0
  // Predicated region
  $region14: #{multi_head_attention.3} parent=0 // pred_check
    %p18 = pneg %p17
  $region15: #{multi_head_attention.3} parent=0 // pred_check_branch
    %20 = sbr.rel (%p18) target = $region17
  $region16: #{multi_head_attention.3} parent=0 // pred_region
    %vm21 = vcmask 261120
    %22 = vst.msk [vmem:[#allocation2] sm:$0xff] %vm21, 0.0
    %23 = vst.msk [vmem:[#allocation2 + $0x8] sm:$0xff] %vm21, 0.0
    %vm24 = vcmask 523264
    %25 = vst.msk [vmem:[#allocation3] sm:$0xff] %vm24, 0.0
    %26 = vst.msk [vmem:[#allocation3 + $0x8] sm:$0xff] %vm24, 0.0
  $region17: #{multi_head_attention.3} parent=0 // pred_fallthru
    _
  %v27 = vld [vmem:[%s0] sm:$0xff]
  %v28 = vld [vmem:[%s0 + $0x8] sm:$0xff]
  %v29 = vpack.c.bf16 %v28, %v27
  %v30 = vld [vmem:[#allocation2] sm:$0xff]
  %v31 = vld [vmem:[#allocation2 + $0x8] sm:$0xff]
  %v32 = vld [vmem:[%s1] sm:$0xf]
  %v33 = vld [vmem:[%s1 + $0x4] sm:$0xf]
  %v34 = vld [vmem:[%s1 + $0x8] sm:$0xf]
  %v35 = vld [vmem:[%s1 + $0xc] sm:$0xf]
  %v40 = vunpack.c.l.b16 %v32
  %v41 = vunpack.c.l.b16 %v33
  %v42 = vunpack.c.l.b16 %v34
  %v43 = vunpack.c.l.b16 %v35
  %v44 = vpack.c.b16 %v41, %v40
  %v45 = vpack.c.b16 %v43, %v42
  %vm48 = vcmask 261120
  %v50 = vsel %vm48, %v29, 0
  %52 = vmatpush.bf16.msra.mxu0 0
  %53 = vmatpush.bf16.msra.mxu0 0
  %54 = vmatpush.bf16.msra.mxu0 0
  %55 = vmatpush.bf16.msra.mxu0 0
  %56 = vmatpush.bf16.msra.mxu0 0
  %57 = vmatpush.bf16.msra.mxu0 0
  %58 = vmatpush.bf16.msra.mxu0 %v45
  %59 = vmatpush.bf16.msra.mxu0 %v44
  %60 = vmatmul.bf16.gmra.mxu0 %v50
  %v61 = vpop.f32.mrf.mxu0
  %v62 = vadd.f32 0.0, %v61
  %v63 = vpop.f32.mrf.mxu0
  %v64 = vadd.f32 0.0, %v63
  %65 = vdwg.mxu0
  %v66 = vadd.f32 %v30, %v62
  %v67 = vadd.f32 %v31, %v64
  %68 = vst.msk [vmem:[#allocation2] sm:$0xff] %vm48, %v66
  %69 = vst.msk [vmem:[#allocation2 + $0x8] sm:$0xff] %vm48, %v67
  %v70 = vld [vmem:[#allocation3] sm:$0xff]
  %v71 = vld [vmem:[#allocation3 + $0x8] sm:$0xff]
  %v72 = vld [vmem:[%s2] sm:$0xf]
  %v73 = vld [vmem:[%s2 + $0x4] sm:$0xf]
  %v74 = vld [vmem:[%s2 + $0x8] sm:$0xf]
  %v75 = vld [vmem:[%s2 + $0xc] sm:$0xf]
  %v80 = vunpack.c.l.b16 %v72
  %v81 = vunpack.c.l.b16 %v73
  %v82 = vunpack.c.l.b16 %v74
  %v83 = vunpack.c.l.b16 %v75
  %v84 = vpack.c.b16 %v81, %v80
  %v85 = vpack.c.b16 %v83, %v82
  %88 = vmatpush.bf16.msra.mxu0 0
  %89 = vmatpush.bf16.msra.mxu0 0
  %90 = vmatpush.bf16.msra.mxu0 0
  %91 = vmatpush.bf16.msra.mxu0 0
  %92 = vmatpush.bf16.msra.mxu0 0
  %93 = vmatpush.bf16.msra.mxu0 0
  %94 = vmatpush.bf16.msra.mxu0 %v85
  %95 = vmatpush.bf16.msra.mxu0 %v84
  %96 = vmatmul.bf16.gmra.mxu0 %v50
  %v97 = vpop.f32.mrf.mxu0
  %v98 = vadd.f32 0.0, %v97
  %v99 = vpop.f32.mrf.mxu0
  %v100 = vadd.f32 0.0, %v99
  %101 = vdwg.mxu0
  %v102 = vadd.f32 %v70, %v98
  %v103 = vadd.f32 %v71, %v100
  %vm104 = vcmask 523264
  %105 = vst.msk [vmem:[#allocation3] sm:$0xff] %vm104, %v102
  %106 = vst.msk [vmem:[#allocation3 + $0x8] sm:$0xff] %vm104, %v103
  // Predicated region
  $region18: #{multi_head_attention.3} parent=0 // pred_check
    %p107 = pneg %p17
  $region19: #{multi_head_attention.3} parent=0 // pred_check_branch
    %109 = sbr.rel (%p107) target = $region21
  $region20: #{multi_head_attention.3} parent=0 // pred_region
    %v110 = vld [vmem:[#allocation2] sm:$0xff]
    %v111 = vld [vmem:[#allocation2 + $0x8] sm:$0xff]
    %v112 = vpack.c.bf16 %v110, %v110
    %v113 = vpack.c.bf16 %v111, %v111
    %vm114 = vcmask 257024
    %115 = vst.msk [vmem:[%s3] sm:$0xf] %vm114, %v112
    %116 = vst.msk [vmem:[%s3 + $0x4] sm:$0xf] %vm114, %v113
    %v117 = vld [vmem:[#allocation3] sm:$0xff]
    %v118 = vld [vmem:[#allocation3 + $0x8] sm:$0xff]
    %v119 = vpack.c.bf16 %v117, %v117
    %v120 = vpack.c.bf16 %v118, %v118
    %vm121 = vcmask 519168
    %122 = vst.msk [vmem:[%s4] sm:$0xf] %vm121, %v119
    %123 = vst.msk [vmem:[%s4 + $0x4] sm:$0xf] %vm121, %v120
  $region21: #{multi_head_attention.3} parent=0 // pred_fallthru
    _
  // Predicated region
  $region22: #{multi_head_attention.3} parent=0 // pred_check
    _
  $region23: #{multi_head_attention.3} parent=0 // pred_check_branch
    %125 = sbr.rel (0) target = $region25
  $region24: #{multi_head_attention.3} parent=0 // pred_region
    _
  $region25: #{multi_head_attention.3} parent=0 // pred_fallthru
    _
  // Predicated region
  $region26: #{multi_head_attention.3} parent=0 // pred_check
    _
  $region27: #{multi_head_attention.3} parent=0 // pred_check_branch
    %127 = sbr.rel (0) target = $region29
  $region28: #{multi_head_attention.3} parent=0 // pred_region
    _
  $region29: #{multi_head_attention.3} parent=0 // pred_fallthru
    _
  // Predicated region
  $region30: #{multi_head_attention.3} parent=0 // pred_check
    _
  $region31: #{multi_head_attention.3} parent=0 // pred_check_branch
    %129 = sbr.rel (0) target = $region33
  $region32: #{multi_head_attention.3} parent=0 // pred_region
    _
  $region33: #{multi_head_attention.3} parent=0 // pred_fallthru
    _
  // Predicated region
  $region34: #{multi_head_attention.3} parent=0 // pred_check
    _
  $region35: #{multi_head_attention.3} parent=0 // pred_check_branch
    %131 = sbr.rel (0) target = $region37
  $region36: #{multi_head_attention.3} parent=0 // pred_region
    _
  $region37: #{multi_head_attention.3} parent=0 // pred_fallthru
    _

// kernel: multi_head_attention.5
$region0: #{multi_head_attention.5}
  #allocation0 [shape = 'u32[]', space=smem, size = 0x4, offset = 0x4, fixed_abs, tag = 'smem constant byte address 0x4 - core index']
  #allocation1 [shape = 'u32[72,128]{1,0:T(1,128)}', space=vmem, size = 0x9000, scoped, tag = 'internal scratch']
  #allocation2 [shape = 'f32[16,32]{1,0:T(8,128)}', space=vmem, size = 0x2000, scoped, tag = 'scratch operand']
  %s0 = inlined_call_operand.vmem [shape: bf16[16,32], index: 0, kind: input, shape index: {}]
  %s1 = inlined_call_operand.vmem [shape: bf16[32,32], index: 1, kind: input, shape index: {}]
  %s2 = inlined_call_operand.hbm [shape: f32[16,32], index: 2, kind: output, shape index: {}]
  %s3 = sld [smem:[#allocation0]]
  $region26: #{multi_head_attention.5} parent=0
    _
  %s5 = ssub.s32 1, %s3
  %s6 = scalar_select 0, %s5, %s3
  $region1: #{multi_head_attention.5} parent=0
    #allocation3 [shape = 'u8[8192]{0}', space=vmem, size = 0x2000, scoped, tag = 'output window, operand 0, single buffered']
    #allocation4 [shape = 's32[1]{0}', space=sflag, size = 0x4, scoped, tag = 'scoped memory for multi_head_attention.5']
    %7 = vsyncpa [#allocation4], 0
    // Predicated region
    $region2: #{multi_head_attention.5} parent=1 // pred_check
      _
    $region3: #{multi_head_attention.5} parent=1 // pred_check_branch
      %9 = sbr.rel (0) target = $region5
    $region4: #{multi_head_attention.5} parent=1 // pred_region
      _
    $region5: #{multi_head_attention.5} parent=1 // pred_fallthru
      _
    // Predicated region
    $region6: #{multi_head_attention.5} parent=1 // pred_check
      _
    $region7: #{multi_head_attention.5} parent=1 // pred_check_branch
      %11 = sbr.rel (0) target = $region9
    $region8: #{multi_head_attention.5} parent=1 // pred_region
      _
    $region9: #{multi_head_attention.5} parent=1 // pred_fallthru
      _
    %p13 = scmp.eq.s32.totalorder 0, 0
    // Predicated region
    $region10: #{multi_head_attention.5} parent=1 // pred_check
      %p14 = pneg %p13
    $region11: #{multi_head_attention.5} parent=1 // pred_check_branch
      %16 = sbr.rel (%p14) target = $region13
    $region12: #{multi_head_attention.5} parent=1 // pred_region
      %vm17 = vcmask 261120
      %18 = vst.msk [vmem:[#allocation2] sm:$0xff] %vm17, 0.0
      %19 = vst.msk [vmem:[#allocation2 + $0x8] sm:$0xff] %vm17, 0.0
    $region13: #{multi_head_attention.5} parent=1 // pred_fallthru
      _
    %v20 = vld [vmem:[#allocation2] sm:$0xff]
    %v21 = vld [vmem:[#allocation2 + $0x8] sm:$0xff]
    %v22 = vld [vmem:[%s0] sm:$0xf]
    %v23 = vld [vmem:[%s0 + $0x4] sm:$0xf]
    %v24 = vld [vmem:[%s1] sm:$0xf]
    %v25 = vld [vmem:[%s1 + $0x4] sm:$0xf]
    %v26 = vld [vmem:[%s1 + $0x8] sm:$0xf]
    %v27 = vld [vmem:[%s1 + $0xc] sm:$0xf]
    %v30 = vunpack.c.l.b16 %v22
    %v31 = vunpack.c.l.b16 %v23
    %v32 = vpack.c.b16 %v31, %v30
    %v37 = vunpack.c.l.b16 %v24
    %v38 = vunpack.c.l.b16 %v25
    %v39 = vunpack.c.l.b16 %v26
    %v40 = vunpack.c.l.b16 %v27
    %v41 = vpack.c.b16 %v38, %v37
    %v42 = vpack.c.b16 %v40, %v39
    %vm45 = vcmask 261120
    %v47 = vsel %vm45, %v32, 0
    %49 = vmatpush.bf16.msra.mxu0 0
    %50 = vmatpush.bf16.msra.mxu0 0
    %51 = vmatpush.bf16.msra.mxu0 0
    %52 = vmatpush.bf16.msra.mxu0 0
    %53 = vmatpush.bf16.msra.mxu0 0
    %54 = vmatpush.bf16.msra.mxu0 0
    %55 = vmatpush.bf16.msra.mxu0 %v42
    %56 = vmatpush.bf16.msra.mxu0 %v41
    %57 = vmatmul.bf16.gmra.mxu0 %v47
    %v58 = vpop.f32.mrf.mxu0
    %v59 = vadd.f32 0.0, %v58
    %v60 = vpop.f32.mrf.mxu0
    %v61 = vadd.f32 0.0, %v60
    %62 = vdwg.mxu0
    %v63 = vadd.f32 %v20, %v59
    %v64 = vadd.f32 %v21, %v61
    %65 = vst.msk [vmem:[#allocation2] sm:$0xff] %vm45, %v63
    %66 = vst.msk [vmem:[#allocation2 + $0x8] sm:$0xff] %vm45, %v64
    // Predicated region
    $region14: #{multi_head_attention.5} parent=1 // pred_check
      %p67 = pneg %p13
    $region15: #{multi_head_attention.5} parent=1 // pred_check_branch
      %69 = sbr.rel (%p67) target = $region17
    $region16: #{multi_head_attention.5} parent=1 // pred_region
      %v70 = vld [vmem:[#allocation2] sm:$0xff]
      %v71 = vld [vmem:[#allocation2 + $0x8] sm:$0xff]
      %72 = vst.msk [vmem:[#allocation3] sm:$0xff] %vm45, %v70
      %73 = vst.msk [vmem:[#allocation3 + $0x8] sm:$0xff] %vm45, %v71
    $region17: #{multi_head_attention.5} parent=1 // pred_fallthru
      _
    // Predicated region
    $region18: #{multi_head_attention.5} parent=1 // pred_check
      _
    $region19: #{multi_head_attention.5} parent=1 // pred_check_branch
      %75 = sbr.rel (0) target = $region21
    $region20: #{multi_head_attention.5} parent=1 // pred_region
      %77 = vsyncadd [#allocation4], 0
      %s78 = sshll.u32 [#allocation3], 4
      %s79 = int_to_ptr.vmem [resolvable:$true] %s78
      %s80 = sshll.u32 %s2, 4
      %s81 = int_to_ptr.hbm [resolvable:$true] %s80
      %86 = dma.vmem_to_hbm [thread:$0]  %s79, 256, %s81, [#allocation4], 128, 128, 8
    $region21: #{multi_head_attention.5} parent=1 // pred_fallthru
      _
    // Predicated region
    $region22: #{multi_head_attention.5} parent=1 // pred_check
      _
    $region23: #{multi_head_attention.5} parent=1 // pred_check_branch
      %88 = sbr.rel (0) target = $region25
    $region24: #{multi_head_attention.5} parent=1 // pred_region
      %90 = dma.done [#allocation4], 256
    $region25: #{multi_head_attention.5} parent=1 // pred_fallthru
      _
    %91 = vsyncpa [#allocation4], 1

// kernel: multi_head_attention.4
$region0: #{multi_head_attention.4}
  #allocation0 [shape = 'u32[]', space=smem, size = 0x4, offset = 0x4, fixed_abs, tag = 'smem constant byte address 0x4 - core index']
  #allocation1 [shape = 'u32[72,128]{1,0:T(1,128)}', space=vmem, size = 0x9000, scoped, tag = 'internal scratch']
  %s0 = inlined_call_operand.vmem [shape: bf16[2,8,32], index: 0, kind: input, shape index: {}]
  %s1 = inlined_call_operand.vmem [shape: bf16[2,8,64], index: 1, kind: input, shape index: {}]
  %s2 = inlined_call_operand.vmem [shape: bf16[2,8,32], index: 2, kind: output, shape index: {0}]
  %s3 = inlined_call_operand.hbm [shape: bf16[2,4,8,8], index: 3, kind: output, shape index: {1}]
  %4 = xla_tuple %s2, %s3
  %s5 = sld [smem:[#allocation0]]
  $region49: #{multi_head_attention.4} parent=0
    _
  %s7 = ssub.s32 1, %s5
  %s8 = scalar_select 0, %s7, %s5
  $region1: #{multi_head_attention.4} parent=0
    #allocation2 [shape = 'u8[16384]{0}', space=vmem, size = 0x4000, scoped, tag = 'output window, operand 1']
    #allocation3 [shape = 's32[2]{0}', space=sflag, size = 0x8, scoped, tag = 'scoped memory for multi_head_attention.4']
    %9 = vsyncpa [#allocation3], 0
    %s10 = scalar_lea.sflag [#allocation3], 1
    %11 = vsyncpa %s10, 0
    loop: start=0, step=1, limit=4
    $region2: #{multi_head_attention.4} parent=1 // loop_pre_header
      _
    $region3: #{multi_head_attention.4} parent=1 // loop_header
      %s13 = sphi 0, %s17
      %p14 = scmp.ge.s32.totalorder %s13, 4
      %s20 = sphi 0, %s32
      %s21 = sphi 0, %s28
      %s22 = sphi 0, %s20
      %s23 = sphi 0, %s21
      %s24 = sphi 0, %s22
      %s25 = sphi 0, %s23
      %s37 = sphi 0, %s39
      %s40 = sphi 0, %s37
      %s41 = sphi 0, %s40
      %s57 = sphi 0, %s41
      %s63 = sphi 0, %s65
      %s66 = sphi 0, %s63
      %s67 = sphi 0, %s66
      %s83 = sphi 0, %s67
      %s91 = sphi 0, %s93
      %s94 = sphi 0, %s91
      %s95 = sphi 0, %s94
      %s111 = sphi 0, %s95
      %s119 = sphi 0, %s121
      %s122 = sphi 0, %s119
      %s123 = sphi 0, %s122
      %s139 = sphi 0, %s123
    $region4: #{multi_head_attention.4} parent=1 // loop_header_branch
      %16 = sbr.rel (%p14) target = $region8
    $region5: #{multi_head_attention.4} parent=1 // loop_body
      %s18 = ssub.s32 %s13, 1
      %s19 = ssub.s32 %s13, 2
      %s26 = sadd.s32 1, %s21
      %p27 = scmp.ge.s32.totalorder %s26, 1
      %s28 = scalar_select %p27, 0, %s26
      %s29 = sadd.s32 1, %s20
      %s30 = scalar_select %p27, %s29, %s20
      %p31 = scmp.ge.s32.totalorder %s30, 2
      %s32 = scalar_select %p31, 0, %s30
      %s33 = ssub.s32 %s20, %s32
      %s34 = ssub.s32 %s21, %s28
      %s35 = sor.u32 %s33, %s34
      %p36 = scmp.eq.s32.totalorder %s35, 0
      %s38 = sadd.s32 %s37, 1
      %s39 = scalar_select %p36, %s37, %s38
      %p42 = pneg %p36
      %p43 = scmp.eq.s32.totalorder %s13, 1
      %p44 = por %p42, %p43
      %p45 = scmp.ne.s32.totalorder %s37, %s40
      %p46 = scmp.eq.s32.totalorder %s13, 0
      %p47 = por %p45, %p46
      %p48 = scmp.ne.s32.totalorder %s37, %s40
      %p49 = scmp.eq.s32.totalorder %s18, 1
      %p50 = por %p48, %p49
      %p51 = scmp.ne.s32.totalorder %s40, %s41
      %p52 = scmp.eq.s32.totalorder %s18, 0
      %p53 = por %p51, %p52
      %p54 = scmp.ne.s32.totalorder %s40, %s41
      %p55 = scmp.eq.s32.totalorder %s19, 1
      %p56 = por %p54, %p55
      %p58 = scmp.ne.s32.totalorder %s41, %s57
      %p59 = scmp.eq.s32.totalorder %s19, 0
      %p60 = por %p58, %p59
      %s61 = ssub.s32 %s20, %s32
      %p62 = scmp.eq.s32.totalorder %s61, 0
      %s64 = sadd.s32 %s63, 1
      %s65 = scalar_select %p62, %s63, %s64
      %p68 = pneg %p62
      %p69 = scmp.eq.s32.totalorder %s13, 1
      %p70 = por %p68, %p69
      %p71 = scmp.ne.s32.totalorder %s63, %s66
      %p72 = scmp.eq.s32.totalorder %s13, 0
      %p73 = por %p71, %p72
      %p74 = scmp.ne.s32.totalorder %s63, %s66
      %p75 = scmp.eq.s32.totalorder %s18, 1
      %p76 = por %p74, %p75
      %p77 = scmp.ne.s32.totalorder %s66, %s67
      %p78 = scmp.eq.s32.totalorder %s18, 0
      %p79 = por %p77, %p78
      %p80 = scmp.ne.s32.totalorder %s66, %s67
      %p81 = scmp.eq.s32.totalorder %s19, 1
      %p82 = por %p80, %p81
      %p84 = scmp.ne.s32.totalorder %s67, %s83
      %p85 = scmp.eq.s32.totalorder %s19, 0
      %p86 = por %p84, %p85
      %s87 = ssub.s32 %s20, %s32
      %s88 = ssub.s32 %s21, %s28
      %s89 = sor.u32 %s87, %s88
      %p90 = scmp.eq.s32.totalorder %s89, 0
      %s92 = sadd.s32 %s91, 1
      %s93 = scalar_select %p90, %s91, %s92
      %p96 = pneg %p90
      %p97 = scmp.eq.s32.totalorder %s13, 1
      %p98 = por %p96, %p97
      %p99 = scmp.ne.s32.totalorder %s91, %s94
      %p100 = scmp.eq.s32.totalorder %s13, 0
      %p101 = por %p99, %p100
      %p102 = scmp.ne.s32.totalorder %s91, %s94
      %p103 = scmp.eq.s32.totalorder %s18, 1
      %p104 = por %p102, %p103
      %p105 = scmp.ne.s32.totalorder %s94, %s95
      %p106 = scmp.eq.s32.totalorder %s18, 0
      %p107 = por %p105, %p106
      %p108 = scmp.ne.s32.totalorder %s94, %s95
      %p109 = scmp.eq.s32.totalorder %s19, 1
      %p110 = por %p108, %p109
      %p112 = scmp.ne.s32.totalorder %s95, %s111
      %p113 = scmp.eq.s32.totalorder %s19, 0
      %p114 = por %p112, %p113
      %s115 = ssub.s32 %s20, %s32
      %s116 = ssub.s32 %s21, %s28
      %s117 = sor.u32 %s115, %s116
      %p118 = scmp.eq.s32.totalorder %s117, 0
      %s120 = sadd.s32 %s119, 1
      %s121 = scalar_select %p118, %s119, %s120
      %p124 = pneg %p118
      %p125 = scmp.eq.s32.totalorder %s13, 1
      %p126 = por %p124, %p125
      %p127 = scmp.ne.s32.totalorder %s119, %s122
      %p128 = scmp.eq.s32.totalorder %s13, 0
      %p129 = por %p127, %p128
      %p130 = scmp.ne.s32.totalorder %s119, %s122
      %p131 = scmp.eq.s32.totalorder %s18, 1
      %p132 = por %p130, %p131
      %p133 = scmp.ne.s32.totalorder %s122, %s123
      %p134 = scmp.eq.s32.totalorder %s18, 0
      %p135 = por %p133, %p134
      %p136 = scmp.ne.s32.totalorder %s122, %s123
      %p137 = scmp.eq.s32.totalorder %s19, 1
      %p138 = por %p136, %p137
      %p140 = scmp.ne.s32.totalorder %s123, %s139
      %p141 = scmp.eq.s32.totalorder %s19, 0
      %p142 = por %p140, %p141
      %p143 = scmp.le.s32.totalorder 1, %s13
      %p144 = scmp.lt.s32.totalorder %s13, 3
      %p145 = pnand %p143, %p144
      %p146 = pneg %p145
      // Predicated region
      $region9: #{multi_head_attention.4} parent=5 // pred_check
        _
      $region10: #{multi_head_attention.4} parent=5 // pred_check_branch
        %148 = sbr.rel (%p145) target = $region12
      $region11: #{multi_head_attention.4} parent=5 // pred_region
        %s149 = ssub.s32 %s13, 1
      $region12: #{multi_head_attention.4} parent=5 // pred_fallthru
        _
      %p150 = scmp.lt.s32.totalorder %s13, 2
      // Predicated region
      $region13: #{multi_head_attention.4} parent=5 // pred_check
        %p151 = pneg %p150
      $region14: #{multi_head_attention.4} parent=5 // pred_check_branch
        %153 = sbr.rel (%p151) target = $region16
      $region15: #{multi_head_attention.4} parent=5 // pred_region
        // Predicated region
        $region17: #{multi_head_attention.4} parent=15 // pred_check
          %p154 = pneg %p47
        $region18: #{multi_head_attention.4} parent=15 // pred_check_branch
          %156 = sbr.rel (%p154) target = $region20
        $region19: #{multi_head_attention.4} parent=15 // pred_region
          %p157 = scmp.lt.s32.totalorder %s20, 1
          %s158 = scalar_select %p157, %s20, 1
          %p159 = scmp.lt.s32.totalorder %s21, 0
          %s160 = scalar_select %p159, %s21, 0
          %s161 = sadd.s32 %s160, %s158
          %s162 = smul.addr %s161, 4
          %s163 = scalar_lea.vmem %s0, %s162
        $region20: #{multi_head_attention.4} parent=15 // pred_fallthru
          _
        // Predicated region
        $region21: #{multi_head_attention.4} parent=15 // pred_check
          %p164 = pneg %p73
        $region22: #{multi_head_attention.4} parent=15 // pred_check_branch
          %166 = sbr.rel (%p164) target = $region24
        $region23: #{multi_head_attention.4} parent=15 // pred_region
          %p167 = scmp.lt.s32.totalorder %s20, 1
          %s168 = scalar_select %p167, %s20, 1
          %s169 = smul.addr %s168, 4
          %s170 = scalar_lea.vmem %s1, %s169
        $region24: #{multi_head_attention.4} parent=15 // pred_fallthru
          _
      $region16: #{multi_head_attention.4} parent=5 // pred_fallthru
        _
      %p171 = scmp.le.s32.totalorder 1, %s13
      %p172 = scmp.lt.s32.totalorder %s13, 3
      %p173 = pnand %p171, %p172
      %p174 = pneg %p173
      // Predicated region
      $region25: #{multi_head_attention.4} parent=5 // pred_check
        _
      $region26: #{multi_head_attention.4} parent=5 // pred_check_branch
        %176 = sbr.rel (%p173) target = $region28
      $region27: #{multi_head_attention.4} parent=5 // pred_region
        %s177 = ssub.s32 %s13, 1
        %p178 = scmp.lt.s32.totalorder %s22, 1
        %s179 = scalar_select %p178, %s22, 1
        %p180 = scmp.lt.s32.totalorder %s23, 0
        %s181 = scalar_select %p180, %s23, 0
        %s182 = sadd.s32 %s181, %s179
        %s183 = smul.addr %s182, 4
        %s184 = scalar_lea.vmem %s0, %s183
        %p185 = pneg %p53
        %p186 = pneg %p50
        %p187 = scmp.lt.s32.totalorder %s22, 1
        %s188 = scalar_select %p187, %s22, 1
        %s189 = smul.addr %s188, 4
        %s190 = scalar_lea.vmem %s1, %s189
        %p191 = pneg %p79
        %p192 = pneg %p76
        %p193 = pneg %p107
        %p194 = pneg %p104
        %p195 = scmp.lt.s32.totalorder %s22, 1
        %s196 = scalar_select %p195, %s22, 1
        %p197 = scmp.lt.s32.totalorder %s23, 0
        %s198 = scalar_select %p197, %s23, 0
        %s199 = sadd.s32 %s198, %s196
        %s200 = smul.addr %s199, 4
        %s201 = scalar_lea.vmem %s2, %s200
        %p202 = pneg %p135
        %p203 = pneg %p132
        %s204 = sand.u32 %s122, 1
        %s205 = scalar_lea.sflag [#allocation3], %s204
        %s206 = sand.u32 %s122, 1
        %s207 = smul.addr %s206, 16
        %s208 = scalar_lea.vmem [#allocation2], %s207
        %p209 = scmp.lt.s32.totalorder %s22, 1
        %s210 = scalar_select %p209, %s22, 1
        %p211 = scmp.lt.s32.totalorder %s23, 0
        %s212 = scalar_select %p211, %s23, 0
        %s213 = sadd.s32 %s212, %s210
        %s214 = smul.addr %s213, 4
        %s215 = scalar_lea.vmem %s0, %s214
        %p216 = scmp.lt.s32.totalorder %s22, 1
        %s217 = scalar_select %p216, %s22, 1
        %s218 = smul.addr %s217, 4
        %s219 = scalar_lea.vmem %s1, %s218
        %p220 = scmp.lt.s32.totalorder %s22, 1
        %s221 = scalar_select %p220, %s22, 1
        %p222 = scmp.lt.s32.totalorder %s23, 0
        %s223 = scalar_select %p222, %s23, 0
        %s224 = sadd.s32 %s223, %s221
        %s225 = smul.addr %s224, 4
        %s226 = scalar_lea.vmem %s2, %s225
        %v228 = vld [vmem:[%s215] sm:$0xf]
        %v229 = vld [vmem:[%s219] sm:$0xf]
        %vm230 = vcmask 64512
        %v232 = vsel %vm230, %v228, 0
        %v235 = vsel %vm230, %v229, 0
        %237 = vmatpush.bf16.xpose.msra.mxu0 0
        %238 = vmatpush.bf16.xpose.msra.mxu0 0
        %239 = vmatpush.bf16.xpose.msra.mxu0 0
        %240 = vmatpush.bf16.xpose.msra.mxu0 0
        %241 = vmatpush.bf16.xpose.msra.mxu0 0
        %242 = vmatpush.bf16.xpose.msra.mxu0 0
        %243 = vmatpush.bf16.xpose.msra.mxu0 0
        %244 = vmatpush.bf16.xpose.msra.mxu0 %v235
        %245 = vmatmul.bf16.gmra.mxu0 %v232
        %v246 = vpop.f32.mrf.mxu0
        %v247 = vadd.f32 0.0, %v246
        %v248 = vpop.f32.mrf.mxu0
        %249 = vdwg.mxu0
        %v250 = vsel %vm230, %v247, -inf
        %251 = vmax.xlane.f32.xlu0 %v250
        %v252 = vpop.xlane.xlu0 %251
        %v253 = vsub.f32 %v247, %v252
        %v254 = vmul.f32 %v253, 1.442695
        %v255 = vpow.pop %v254
        %v256 = vsel %vm230, %v255, 0.0
        %257 = vadd.xlane.f32.xlu0 %v256
        %v258 = vpop.xlane.xlu0 %257
        %v259 = vrcp.pop %v258
        %v260 = vmul.f32 %v255, %v259
        %v261 = vpack.c.bf16 %v260, %v260
        %vm262 = vcmask 60416
        %263 = vst.msk [vmem:[%s208] sm:$0xf] %vm262, %v261
        %v265 = vunpack.c.l.b16 %v229
        %v266 = vpack.c.b16 %v265, %v265
        %267 = vrot.lane.b32.xlu0 %v266, 96
        %v268 = vpop.permute.xlu0 %267
        %v270 = vsel %vm230, %v261, 0
        %vm272 = vcmask 1043456
        %v274 = vsel %vm272, %v268, 0
        %276 = vmatpush.bf16.msra.mxu0 0
        %277 = vmatpush.bf16.msra.mxu0 0
        %278 = vmatpush.bf16.msra.mxu0 0
        %279 = vmatpush.bf16.msra.mxu0 0
        %280 = vmatpush.bf16.msra.mxu0 0
        %281 = vmatpush.bf16.msra.mxu0 0
        %282 = vmatpush.bf16.msra.mxu0 0
        %283 = vmatpush.bf16.msra.mxu0 %v274
        %284 = vmatmul.bf16.gmra.mxu0 %v270
        %v285 = vpop.f32.mrf.mxu0
        %v286 = vadd.f32 0.0, %v285
        %v287 = vpop.f32.mrf.mxu0
        %288 = vdwg.mxu0
        %v289 = vpack.c.bf16 %v286, %v286
        %290 = vst.msk [vmem:[%s226] sm:$0xf] %vm262, %v289
        %v291 = vld [vmem:[%s215] sm:$0xf]
        %v292 = vld [vmem:[%s219] sm:$0xf]
        %v294 = vunpack.c.l.b16 %v291
        %v295 = vpack.c.b16 %v294, %v294
        %296 = vrot.lane.b32.xlu0 %v295, 120
        %v297 = vpop.permute.xlu0 %296
        %v299 = vunpack.c.l.b16 %v292
        %v300 = vpack.c.b16 %v299, %v299
        %301 = vrot.lane.b32.xlu0 %v300, 120
        %v302 = vpop.permute.xlu0 %301
        %v304 = vsel %vm230, %v297, 0
        %v307 = vsel %vm230, %v302, 0
        %309 = vmatpush.bf16.xpose.msra.mxu0 0
        %310 = vmatpush.bf16.xpose.msra.mxu0 0
        %311 = vmatpush.bf16.xpose.msra.mxu0 0
        %312 = vmatpush.bf16.xpose.msra.mxu0 0
        %313 = vmatpush.bf16.xpose.msra.mxu0 0
        %314 = vmatpush.bf16.xpose.msra.mxu0 0
        %315 = vmatpush.bf16.xpose.msra.mxu0 0
        %316 = vmatpush.bf16.xpose.msra.mxu0 %v307
        %317 = vmatmul.bf16.gmra.mxu0 %v304
        %v318 = vpop.f32.mrf.mxu0
        %v319 = vadd.f32 0.0, %v318
        %v320 = vpop.f32.mrf.mxu0
        %321 = vdwg.mxu0
        %v322 = vsel %vm230, %v319, -inf
        %323 = vmax.xlane.f32.xlu0 %v322
        %v324 = vpop.xlane.xlu0 %323
        %v325 = vsub.f32 %v319, %v324
        %v326 = vmul.f32 %v325, 1.442695
        %v327 = vpow.pop %v326
        %v328 = vsel %vm230, %v327, 0.0
        %329 = vadd.xlane.f32.xlu0 %v328
        %v330 = vpop.xlane.xlu0 %329
        %v331 = vrcp.pop %v330
        %v332 = vmul.f32 %v327, %v331
        %v333 = vpack.c.bf16 %v332, %v332
        %s334 = scalar_lea.vmem %s208, 4 [#allocation2]
        %335 = vst.msk [vmem:[%s334] sm:$0xf] %vm262, %v333
        %336 = vrot.lane.b32.xlu0 %v300, 88
        %v337 = vpop.permute.xlu0 %336
        %v339 = vsel %vm230, %v333, 0
        %v342 = vsel %vm272, %v337, 0
        %344 = vmatpush.bf16.msra.mxu0 0
        %345 = vmatpush.bf16.msra.mxu0 0
        %346 = vmatpush.bf16.msra.mxu0 0
        %347 = vmatpush.bf16.msra.mxu0 0
        %348 = vmatpush.bf16.msra.mxu0 0
        %349 = vmatpush.bf16.msra.mxu0 0
        %350 = vmatpush.bf16.msra.mxu0 0
        %351 = vmatpush.bf16.msra.mxu0 %v342
        %352 = vmatmul.bf16.gmra.mxu0 %v339
        %v353 = vpop.f32.mrf.mxu0
        %v354 = vadd.f32 0.0, %v353
        %v355 = vpop.f32.mrf.mxu0
        %356 = vdwg.mxu0
        %v357 = vpack.c.bf16 %v354, %v354
        %359 = vrot.lane.b32.xlu0 %v357, 8
        %v360 = vpop.permute.xlu0 %359
        %vm362 = vcmask 126016
        %363 = vst.msk [vmem:[%s226] sm:$0xf] %vm362, %v360
        %v364 = vld [vmem:[%s215] sm:$0xf]
        %v365 = vld [vmem:[%s219] sm:$0xf]
        %v367 = vunpack.c.l.b16 %v364
        %v368 = vpack.c.b16 %v367, %v367
        %369 = vrot.lane.b32.xlu0 %v368, 112
        %v370 = vpop.permute.xlu0 %369
        %v372 = vunpack.c.l.b16 %v365
        %v373 = vpack.c.b16 %v372, %v372
        %374 = vrot.lane.b32.xlu0 %v373, 112
        %v375 = vpop.permute.xlu0 %374
        %v377 = vsel %vm230, %v370, 0
        %v380 = vsel %vm230, %v375, 0
        %382 = vmatpush.bf16.xpose.msra.mxu0 0
        %383 = vmatpush.bf16.xpose.msra.mxu0 0
        %384 = vmatpush.bf16.xpose.msra.mxu0 0
        %385 = vmatpush.bf16.xpose.msra.mxu0 0
        %386 = vmatpush.bf16.xpose.msra.mxu0 0
        %387 = vmatpush.bf16.xpose.msra.mxu0 0
        %388 = vmatpush.bf16.xpose.msra.mxu0 0
        %389 = vmatpush.bf16.xpose.msra.mxu0 %v380
        %390 = vmatmul.bf16.gmra.mxu0 %v377
        %v391 = vpop.f32.mrf.mxu0
        %v392 = vadd.f32 0.0, %v391
        %v393 = vpop.f32.mrf.mxu0
        %394 = vdwg.mxu0
        %v395 = vsel %vm230, %v392, -inf
        %396 = vmax.xlane.f32.xlu0 %v395
        %v397 = vpop.xlane.xlu0 %396
        %v398 = vsub.f32 %v392, %v397
        %v399 = vmul.f32 %v398, 1.442695
        %v400 = vpow.pop %v399
        %v401 = vsel %vm230, %v400, 0.0
        %402 = vadd.xlane.f32.xlu0 %v401
        %v403 = vpop.xlane.xlu0 %402
        %v404 = vrcp.pop %v403
        %v405 = vmul.f32 %v400, %v404
        %v406 = vpack.c.bf16 %v405, %v405
        %s407 = scalar_lea.vmem %s208, 8 [#allocation2]
        %408 = vst.msk [vmem:[%s407] sm:$0xf] %vm262, %v406
        %409 = vrot.lane.b32.xlu0 %v373, 80
        %v410 = vpop.permute.xlu0 %409
        %v412 = vsel %vm230, %v406, 0
        %v415 = vsel %vm272, %v410, 0
        %417 = vmatpush.bf16.msra.mxu0 0
        %418 = vmatpush.bf16.msra.mxu0 0
        %419 = vmatpush.bf16.msra.mxu0 0
        %420 = vmatpush.bf16.msra.mxu0 0
        %421 = vmatpush.bf16.msra.mxu0 0
        %422 = vmatpush.bf16.msra.mxu0 0
        %423 = vmatpush.bf16.msra.mxu0 0
        %424 = vmatpush.bf16.msra.mxu0 %v415
        %425 = vmatmul.bf16.gmra.mxu0 %v412
        %v426 = vpop.f32.mrf.mxu0
        %v427 = vadd.f32 0.0, %v426
        %v428 = vpop.f32.mrf.mxu0
        %429 = vdwg.mxu0
        %v430 = vpack.c.bf16 %v427, %v427
        %432 = vrot.lane.b32.xlu0 %v430, 16
        %v433 = vpop.permute.xlu0 %432
        %vm435 = vcmask 191616
        %436 = vst.msk [vmem:[%s226] sm:$0xf] %vm435, %v433
        %v437 = vld [vmem:[%s215] sm:$0xf]
        %v438 = vld [vmem:[%s219] sm:$0xf]
        %v440 = vunpack.c.l.b16 %v437
        %v441 = vpack.c.b16 %v440, %v440
        %442 = vrot.lane.b32.xlu0 %v441, 104
        %v443 = vpop.permute.xlu0 %442
        %v445 = vunpack.c.l.b16 %v438
        %v446 = vpack.c.b16 %v445, %v445
        %447 = vrot.lane.b32.xlu0 %v446, 104
        %v448 = vpop.permute.xlu0 %447
        %v450 = vsel %vm230, %v443, 0
        %v453 = vsel %vm230, %v448, 0
        %455 = vmatpush.bf16.xpose.msra.mxu0 0
        %456 = vmatpush.bf16.xpose.msra.mxu0 0
        %457 = vmatpush.bf16.xpose.msra.mxu0 0
        %458 = vmatpush.bf16.xpose.msra.mxu0 0
        %459 = vmatpush.bf16.xpose.msra.mxu0 0
        %460 = vmatpush.bf16.xpose.msra.mxu0 0
        %461 = vmatpush.bf16.xpose.msra.mxu0 0
        %462 = vmatpush.bf16.xpose.msra.mxu0 %v453
        %463 = vmatmul.bf16.gmra.mxu0 %v450
        %v464 = vpop.f32.mrf.mxu0
        %v465 = vadd.f32 0.0, %v464
        %v466 = vpop.f32.mrf.mxu0
        %467 = vdwg.mxu0
        %v468 = vsel %vm230, %v465, -inf
        %469 = vmax.xlane.f32.xlu0 %v468
        %v470 = vpop.xlane.xlu0 %469
        %v471 = vsub.f32 %v465, %v470
        %v472 = vmul.f32 %v471, 1.442695
        %v473 = vpow.pop %v472
        %v474 = vsel %vm230, %v473, 0.0
        %475 = vadd.xlane.f32.xlu0 %v474
        %v476 = vpop.xlane.xlu0 %475
        %v477 = vrcp.pop %v476
        %v478 = vmul.f32 %v473, %v477
        %v479 = vpack.c.bf16 %v478, %v478
        %s480 = scalar_lea.vmem %s208, 12 [#allocation2]
        %481 = vst.msk [vmem:[%s480] sm:$0xf] %vm262, %v479
        %482 = vrot.lane.b32.xlu0 %v446, 72
        %v483 = vpop.permute.xlu0 %482
        %v485 = vsel %vm230, %v479, 0
        %v488 = vsel %vm272, %v483, 0
        %490 = vmatpush.bf16.msra.mxu0 0
        %491 = vmatpush.bf16.msra.mxu0 0
        %492 = vmatpush.bf16.msra.mxu0 0
        %493 = vmatpush.bf16.msra.mxu0 0
        %494 = vmatpush.bf16.msra.mxu0 0
        %495 = vmatpush.bf16.msra.mxu0 0
        %496 = vmatpush.bf16.msra.mxu0 0
        %497 = vmatpush.bf16.msra.mxu0 %v488
        %498 = vmatmul.bf16.gmra.mxu0 %v485
        %v499 = vpop.f32.mrf.mxu0
        %v500 = vadd.f32 0.0, %v499
        %v501 = vpop.f32.mrf.mxu0
        %502 = vdwg.mxu0
        %v503 = vpack.c.bf16 %v500, %v500
        %505 = vrot.lane.b32.xlu0 %v503, 24
        %v506 = vpop.permute.xlu0 %505
        %vm508 = vcmask 257216
        %509 = vst.msk [vmem:[%s226] sm:$0xf] %vm508, %v506
        %p510 = scmp.lt.s32.totalorder %s22, 1
        %s511 = scalar_select %p510, %s22, 1
        %p512 = scmp.lt.s32.totalorder %s23, 0
        %s513 = scalar_select %p512, %s23, 0
        %s514 = sadd.s32 %s513, %s511
        %s515 = smul.addr %s514, 4
        %s516 = scalar_lea.vmem %s2, %s515
        %s517 = sand.u32 %s122, 1
        %s518 = scalar_lea.sflag [#allocation3], %s517
        %s519 = sand.u32 %s122, 1
        %s520 = smul.addr %s519, 16
        %s521 = scalar_lea.vmem [#allocation2], %s520
        // Predicated region
        $region29: #{multi_head_attention.4} parent=27 // pred_check
          %p522 = pneg %p104
        $region30: #{multi_head_attention.4} parent=27 // pred_check_branch
          %524 = sbr.rel (%p522) target = $region32
        $region31: #{multi_head_attention.4} parent=27 // pred_region
          _
        $region32: #{multi_head_attention.4} parent=27 // pred_fallthru
          _
        // Predicated region
        $region33: #{multi_head_attention.4} parent=27 // pred_check
          %p525 = pneg %p132
        $region34: #{multi_head_attention.4} parent=27 // pred_check_branch
          %527 = sbr.rel (%p525) target = $region36
        $region35: #{multi_head_attention.4} parent=27 // pred_region
          %529 = vsyncadd %s518, 0
          %s530 = smul.addr %s22, 4
          %s531 = sadd.s32 %s23, %s530
          %s532 = smul.addr %s531, 4
          %s533 = scalar_lea.hbm %s3, %s532
          %s534 = sshll.u32 %s521, 4
          %s535 = int_to_ptr.vmem [resolvable:$true] %s534
          %s536 = sshll.u32 %s533, 4
          %s537 = int_to_ptr.hbm [resolvable:$true] %s536
          %542 = dma.vmem_to_hbm [thread:$0]  %s535, 256, %s537, %s518, 64, 64, 4
        $region36: #{multi_head_attention.4} parent=27 // pred_fallthru
          _
      $region28: #{multi_head_attention.4} parent=5 // pred_fallthru
        _
      %p543 = scmp.le.s32.totalorder 2, %s13
      // Predicated region
      $region37: #{multi_head_attention.4} parent=5 // pred_check
        %p544 = pneg %p543
      $region38: #{multi_head_attention.4} parent=5 // pred_check_branch
        %546 = sbr.rel (%p544) target = $region40
      $region39: #{multi_head_attention.4} parent=5 // pred_region
        %s547 = ssub.s32 %s13, 2
        // Predicated region
        $region41: #{multi_head_attention.4} parent=39 // pred_check
          %p548 = pneg %p110
        $region42: #{multi_head_attention.4} parent=39 // pred_check_branch
          %550 = sbr.rel (%p548) target = $region44
        $region43: #{multi_head_attention.4} parent=39 // pred_region
          %p551 = scmp.lt.s32.totalorder %s24, 1
          %s552 = scalar_select %p551, %s24, 1
          %p553 = scmp.lt.s32.totalorder %s25, 0
          %s554 = scalar_select %p553, %s25, 0
          %s555 = sadd.s32 %s554, %s552
          %s556 = smul.addr %s555, 4
          %s557 = scalar_lea.vmem %s2, %s556
        $region44: #{multi_head_attention.4} parent=39 // pred_fallthru
          _
        // Predicated region
        $region45: #{multi_head_attention.4} parent=39 // pred_check
          %p558 = pneg %p138
        $region46: #{multi_head_attention.4} parent=39 // pred_check_branch
          %560 = sbr.rel (%p558) target = $region48
        $region47: #{multi_head_attention.4} parent=39 // pred_region
          %s561 = sand.u32 %s123, 1
          %s562 = scalar_lea.sflag [#allocation3], %s561
          %s563 = sand.u32 %s123, 1
          %s564 = smul.addr %s563, 16
          %s565 = scalar_lea.vmem [#allocation2], %s564
          %567 = dma.done %s562, 256
        $region48: #{multi_head_attention.4} parent=39 // pred_fallthru
          _
      $region40: #{multi_head_attention.4} parent=5 // pred_fallthru
        _
    $region6: #{multi_head_attention.4} parent=1 // loop_footer
      %s17 = sadd.s32 1, %s13
    $region7: #{multi_head_attention.4} parent=1 // loop_footer_branch
      %12 = sbr.rel target = $region3
    $region8: #{multi_head_attention.4} parent=1 // loop_exit
      _
    %568 = vsyncpa [#allocation3], 1
    %s569 = scalar_lea.sflag [#allocation3], 1
    %570 = vsyncpa %s569, 1

</llo_original>
